<compile_context>
chip_gen: v5e
topology: v5e:2x2
jax: 0.10.0
libtpu: 0.0.40
codegen_flags: <defaults>
</compile_context>

<pallas_src>
import jax
import jax.numpy as jnp
from jax.experimental import pallas as pl
from jax.experimental.pallas import tpu as pltpu

text = 'Hello there. This is a simple LSTM next character predictor. Enjoy!'
chars = sorted(list(set(text)))
VOCAB_SIZE = len(chars)

EMBED_SIZE = 16
HIDDEN_SIZE = 64

H_PAD = 128   # hidden padded to one full 128-lane group
V_PAD = 128   # vocab padded to one full 128-lane group


def _lstm_fc_kernel(x_ref, wih_ref, b_ref, whh_ref, wfc_ref, bfc_ref,
                    logits_ref, state_ref, gx_ref):
    # x_ref:      (T*B, E)   bf16  time-major flattened embeddings
    # wih_ref:    (E, 4*Hp)  bf16  input->gates weights (transposed, reordered, padded)
    # b_ref:      (1, 4*Hp)  f32   b_ih + b_hh (reordered, padded)
    # whh_ref:    (Hp, 4*Hp) bf16  hidden->gates weights (transposed, reordered, padded)
    # wfc_ref:    (Hp, Vp)   bf16  final linear weights (transposed, padded)
    # bfc_ref:    (1, Vp)    f32   final linear bias (padded)
    # logits_ref: (B, Vp)    f32
    # state_ref:  (B, 2*Hp)  f32   [h_n | c_n]
    # gx_ref:     (T*B, 4*Hp) f32  VMEM scratch for the input projection
    B = logits_ref.shape[0]
    TB = x_ref.shape[0]
    T = TB // B
    Hp = whh_ref.shape[0]

    # Fused input projection for ALL timesteps: single MXU matmul, off the
    # serial critical path, result stays VMEM-resident (sublane-dense layout).
    gx_ref[...] = (jnp.dot(x_ref[...], wih_ref[...],
                           preferred_element_type=jnp.float32)
                   + b_ref[...])

    h = jnp.zeros((B, Hp), jnp.float32)
    c = jnp.zeros((B, Hp), jnp.float32)

    # Static unroll: T is a trace-time constant, so every slice is static and
    # the LLO scheduler sees the whole recurrence (MXU pop overlapped with
    # adjacent-step EUP work).
    # TODO(synk): switch to lax.fori_loop(..., unroll=4..8) if T grows beyond a
    # few dozen steps (instruction-memory / compile-time guard).
    # TODO(synk): keep W_hh weight-stationary on the MXU via matmul_push_rhs /
    # matmul_acc_lhs / matmul_pop once the vex slot is shown to be saturated by
    # per-step weight re-pushes.
    for t in range(T):
        gates = (gx_ref[pl.ds(t * B, B), :]
                 + jnp.dot(h.astype(jnp.bfloat16), whh_ref[...],
                           preferred_element_type=jnp.float32))
        # Gate columns pre-reordered to (i, f, o, g): one contiguous sigmoid
        # slab (single EUP tanh push via 0.5*tanh(0.5x)+0.5) + one tanh slab.
        sig = 0.5 * jnp.tanh(0.5 * gates[:, 0:3 * Hp]) + 0.5
        i_g = sig[:, 0:Hp]
        f_g = sig[:, Hp:2 * Hp]
        o_g = sig[:, 2 * Hp:3 * Hp]
        g_g = jnp.tanh(gates[:, 3 * Hp:4 * Hp])
        c = f_g * c + i_g * g_g
        h = o_g * jnp.tanh(c)

    # fc applied to out[:, -1, :] == h_n for a single-layer LSTM.
    logits_ref[...] = (jnp.dot(h.astype(jnp.bfloat16), wfc_ref[...],
                               preferred_element_type=jnp.float32)
                       + bfc_ref[...])
    # Merged (h | c) state output: one lane-dense (B, 2*Hp) writeback.
    state_ref[:, 0:Hp] = h
    state_ref[:, Hp:2 * Hp] = c


def init_params(key, vocab_size=VOCAB_SIZE, embed_size=EMBED_SIZE,
                hidden_size=HIDDEN_SIZE):
    ks = jax.random.split(key, 7)
    scale = 0.1
    # NOTE: 0.1*normal differs from PyTorch's default uniform init
    # (model-fidelity detail only, not a kernel concern).
    params = {
        "embed": scale * jax.random.normal(ks[0], (vocab_size, embed_size), jnp.float32),
        # stored pre-transposed: (in_features, 4H) / (H, 4H); PyTorch gate
        # order (i, f, g, o) along the 4H axis.
        "w_ih":  scale * jax.random.normal(ks[1], (embed_size, 4 * hidden_size), jnp.float32),
        "w_hh":  scale * jax.random.normal(ks[2], (hidden_size, 4 * hidden_size), jnp.float32),
        "b_ih":  scale * jax.random.normal(ks[3], (4 * hidden_size,), jnp.float32),
        "b_hh":  scale * jax.random.normal(ks[4], (4 * hidden_size,), jnp.float32),
        "w_fc":  scale * jax.random.normal(ks[5], (hidden_size, vocab_size), jnp.float32),
        "b_fc":  scale * jax.random.normal(ks[6], (vocab_size,), jnp.float32),
    }
    return params


def _pad_reorder_gates(w, H, Hp):
    """Reorder PyTorch gate blocks (i,f,g,o) -> kernel order (i,f,o,g) and
    zero-pad each gate block along the last axis from H to Hp."""
    lead = w.shape[:-1]
    w4 = w.reshape(*lead, 4, H)
    w4 = w4[..., jnp.array([0, 1, 3, 2]), :]
    w4 = jnp.pad(w4, [(0, 0)] * len(lead) + [(0, 0), (0, Hp - H)])
    return w4.reshape(*lead, 4 * Hp)


def prepare_params(params):
    """One-time pad / reorder / transpose / cast of all weights so the per-call
    wrapper launches no extra pad/cast XLA ops and no weight re-streaming."""
    H = params["w_hh"].shape[0]
    V = params["w_fc"].shape[1]
    Hp, Vp = H_PAD, V_PAD

    w_ih_p = _pad_reorder_gates(params["w_ih"], H, Hp).astype(jnp.bfloat16)   # (E, 4Hp)
    b_p = _pad_reorder_gates((params["b_ih"] + params["b_hh"]).reshape(1, 4 * H),
                             H, Hp)                                           # (1, 4Hp) f32
    w_hh_p = _pad_reorder_gates(params["w_hh"], H, Hp)                        # (H, 4Hp)
    w_hh_p = jnp.pad(w_hh_p, ((0, Hp - H), (0, 0))).astype(jnp.bfloat16)      # (Hp, 4Hp)
    w_fc_p = jnp.pad(params["w_fc"],
                     ((0, Hp - H), (0, Vp - V))).astype(jnp.bfloat16)         # (Hp, Vp)
    b_fc_p = jnp.pad(params["b_fc"], ((0, Vp - V),)).reshape(1, Vp)           # (1, Vp) f32

    return {
        "embed": params["embed"],     # f32; gather stays in plain JAX
        "w_ih_p": w_ih_p, "b_p": b_p, "w_hh_p": w_hh_p,
        "w_fc_p": w_fc_p, "b_fc_p": b_fc_p,
        "H": H, "V": V,
    }


def lstm_model_forward(prepped, x_tokens):
    """x_tokens: (B, T) int32 token ids.  Returns (logits, (h_n, c_n))."""
    B, T = x_tokens.shape
    H, V = prepped["H"], prepped["V"]
    Hp, Vp = H_PAD, V_PAD

    # Embedding lookup (gather) stays in plain JAX; flattened time-major so the
    # kernel sees a sublane-dense (T*B, E) slab.
    x_emb = prepped["embed"][x_tokens]                                   # (B, T, E) f32
    x_flat = (jnp.transpose(x_emb, (1, 0, 2))                            # (T, B, E)
              .reshape(T * B, EMBED_SIZE).astype(jnp.bfloat16))          # (T*B, E) bf16

    vmem = pl.BlockSpec(memory_space=pltpu.MemorySpace.VMEM)

    # TODO(synk): if T*B scales up, stream the input projection over a
    # T-chunked "arbitrary" grid (h/c carried in scratch) and add a "parallel"
    # batch axis for v7x's two TensorCores instead of whole-array residency.
    logits_p, state_p = pl.pallas_call(
        _lstm_fc_kernel,
        out_shape=(
            jax.ShapeDtypeStruct((B, Vp), jnp.float32),
            jax.ShapeDtypeStruct((B, 2 * Hp), jnp.float32),
        ),
        in_specs=[vmem] * 6,
        out_specs=(vmem, vmem),
        scratch_shapes=[pltpu.VMEM((T * B, 4 * Hp), jnp.float32)],
    )(x_flat, prepped["w_ih_p"], prepped["b_p"], prepped["w_hh_p"],
      prepped["w_fc_p"], prepped["b_fc_p"])

    # Slice padding away; PyTorch hidden convention: (num_layers=1, B, H).
    logits = logits_p[:, :V]
    hidden = (state_p[:, :H][None, :, :], state_p[:, Hp:Hp + H][None, :, :])
    return logits, hidden


def _reference_forward(params, x_tokens):
    """Pure-JAX f32 reference matching nn.LSTM(batch_first=True) + Linear."""
    B, T = x_tokens.shape
    H = params["w_hh"].shape[0]
    x = params["embed"][x_tokens]                       # (B, T, E)
    h = jnp.zeros((B, H), jnp.float32)
    c = jnp.zeros((B, H), jnp.float32)
    b = (params["b_ih"] + params["b_hh"])[None, :]
    for t in range(T):
        gates = x[:, t, :] @ params["w_ih"] + h @ params["w_hh"] + b
        i_g = jax.nn.sigmoid(gates[:, 0:H])
        f_g = jax.nn.sigmoid(gates[:, H:2 * H])
        g_g = jnp.tanh(gates[:, 2 * H:3 * H])
        o_g = jax.nn.sigmoid(gates[:, 3 * H:4 * H])
        c = f_g * c + i_g * g_g
        h = o_g * jnp.tanh(c)
    logits = h @ params["w_fc"] + params["b_fc"][None, :]
    return logits, (h[None], c[None])


if __name__ == "__main__":
    key = jax.random.PRNGKey(0)
    k_params, k_data = jax.random.split(key)

    params = init_params(k_params)
    prepped = prepare_params(params)     # one-time weight pad/reorder/cast

    batch, seq_len = 2, 8
    x_tokens = jax.random.randint(k_data, (batch, seq_len), 0, VOCAB_SIZE,
                                  dtype=jnp.int32)

    logits, (h_n, c_n) = lstm_model_forward(prepped, x_tokens)
    jax.block_until_ready((logits, h_n, c_n))

    assert logits.shape == (batch, VOCAB_SIZE)
    assert h_n.shape == (1, batch, HIDDEN_SIZE)
    assert c_n.shape == (1, batch, HIDDEN_SIZE)

    # Numerical check against the f32 pure-JAX reference (bf16 MXU tolerance).
    ref_logits, (ref_h, ref_c) = _reference_forward(params, x_tokens)
    assert jnp.allclose(logits, ref_logits, atol=5e-2, rtol=5e-2)
    assert jnp.allclose(h_n, ref_h, atol=5e-2, rtol=5e-2)
    assert jnp.allclose(c_n, ref_c, atol=5e-2, rtol=5e-2)

    print("KERNEL_OK")
</pallas_src>

<mosaic_0001>
module attributes {stable_mosaic.version = 11 : i64} {
  func.func @_lstm_fc_kernel(%arg0: memref<16x16xbf16, #tpu.memory_space<vmem>>, %arg1: memref<16x512xbf16, #tpu.memory_space<vmem>>, %arg2: memref<1x512xf32, #tpu.memory_space<vmem>>, %arg3: memref<128x512xbf16, #tpu.memory_space<vmem>>, %arg4: memref<128x128xbf16, #tpu.memory_space<vmem>>, %arg5: memref<1x128xf32, #tpu.memory_space<vmem>>, %arg6: memref<2x128xf32, #tpu.memory_space<vmem>>, %arg7: memref<2x256xf32, #tpu.memory_space<vmem>>, %arg8: memref<16x512xf32, #tpu.memory_space<vmem>>) attributes {dimension_semantics = [], scalar_prefetch = 0 : i64, scratch_operands = 1 : i64, tpu.core_type = #tpu.core_type<tc>} {
    %c0 = arith.constant 0 : index
    %c0_0 = arith.constant 0 : index
    %0 = vector.load %arg0[%c0, %c0_0] : memref<16x16xbf16, #tpu.memory_space<vmem>>, vector<16x16xbf16>
    %c0_1 = arith.constant 0 : index
    %c0_2 = arith.constant 0 : index
    %1 = vector.load %arg1[%c0_1, %c0_2] : memref<16x512xbf16, #tpu.memory_space<vmem>>, vector<16x512xbf16>
    %cst = arith.constant dense<0.000000e+00> : vector<16x512xf32>
    %2 = tpu.matmul %0, %1, %cst {dimension_numbers = #tpu.dot_dimension_numbers<[1], [0], [0], [1], [0, 0, 1, 1], [], []>} : vector<16x16xbf16>, vector<16x512xbf16>, vector<16x512xf32> -> vector<16x512xf32>
    %c0_3 = arith.constant 0 : index
    %c0_4 = arith.constant 0 : index
    %3 = vector.load %arg2[%c0_3, %c0_4] : memref<1x512xf32, #tpu.memory_space<vmem>>, vector<1x512xf32>
    %4 = vector.broadcast %3 : vector<1x512xf32> to vector<16x512xf32>
    %5 = arith.addf %2, %4 : vector<16x512xf32>
    %c0_5 = arith.constant 0 : index
    %c0_6 = arith.constant 0 : index
    %6 = vector.load %arg8[%c0_5, %c0_6] : memref<16x512xf32, #tpu.memory_space<vmem>>, vector<16x512xf32>
    tpu.vector_store %arg8[%c0_5, %c0_6], %5 {strides = array<i32>} : memref<16x512xf32, #tpu.memory_space<vmem>>, vector<16x512xf32>,
    %cst_7 = arith.constant 0.000000e+00 : f32
    %7 = vector.broadcast %cst_7 : f32 to vector<2x128xf32>
    %cst_8 = arith.constant 0.000000e+00 : f32
    %8 = vector.broadcast %cst_8 : f32 to vector<2x128xf32>
    %c0_9 = arith.constant 0 : index
    %c0_10 = arith.constant 0 : index
    %9 = vector.load %arg8[%c0_9, %c0_10] : memref<16x512xf32, #tpu.memory_space<vmem>>, vector<2x512xf32>
    %10 = arith.truncf %7 : vector<2x128xf32> to vector<2x128xbf16>
    %c0_11 = arith.constant 0 : index
    %c0_12 = arith.constant 0 : index
    %11 = vector.load %arg3[%c0_11, %c0_12] : memref<128x512xbf16, #tpu.memory_space<vmem>>, vector<128x512xbf16>
    %cst_13 = arith.constant dense<0.000000e+00> : vector<2x512xf32>
    %12 = tpu.matmul %10, %11, %cst_13 {dimension_numbers = #tpu.dot_dimension_numbers<[1], [0], [0], [1], [0, 0, 1, 1], [], []>} : vector<2x128xbf16>, vector<128x512xbf16>, vector<2x512xf32> -> vector<2x512xf32>
    %13 = arith.addf %9, %12 : vector<2x512xf32>
    %14 = vector.extract_strided_slice %13 {offsets = [0, 0], sizes = [2, 384], strides = [1, 1]} : vector<2x512xf32> to vector<2x384xf32>
    %cst_14 = arith.constant 5.000000e-01 : f32
    %15 = vector.broadcast %cst_14 : f32 to vector<2x384xf32>
    %16 = arith.mulf %15, %14 : vector<2x384xf32>
    %17 = math.tanh %16 : vector<2x384xf32>
    %cst_15 = arith.constant 5.000000e-01 : f32
    %18 = vector.broadcast %cst_15 : f32 to vector<2x384xf32>
    %19 = arith.mulf %18, %17 : vector<2x384xf32>
    %cst_16 = arith.constant 5.000000e-01 : f32
    %20 = vector.broadcast %cst_16 : f32 to vector<2x384xf32>
    %21 = arith.addf %19, %20 : vector<2x384xf32>
    %22 = vector.extract_strided_slice %21 {offsets = [0, 0], sizes = [2, 128], strides = [1, 1]} : vector<2x384xf32> to vector<2x128xf32>
    %23 = vector.extract_strided_slice %21 {offsets = [0, 128], sizes = [2, 128], strides = [1, 1]} : vector<2x384xf32> to vector<2x128xf32>
    %24 = vector.extract_strided_slice %21 {offsets = [0, 256], sizes = [2, 128], strides = [1, 1]} : vector<2x384xf32> to vector<2x128xf32>
    %25 = vector.extract_strided_slice %13 {offsets = [0, 384], sizes = [2, 128], strides = [1, 1]} : vector<2x512xf32> to vector<2x128xf32>
    %26 = math.tanh %25 : vector<2x128xf32>
    %27 = arith.mulf %23, %8 : vector<2x128xf32>
    %28 = arith.mulf %22, %26 : vector<2x128xf32>
    %29 = arith.addf %27, %28 : vector<2x128xf32>
    %30 = math.tanh %29 : vector<2x128xf32>
    %31 = arith.mulf %24, %30 : vector<2x128xf32>
    %c2 = arith.constant 2 : index
    %c0_17 = arith.constant 0 : index
    %32 = vector.load %arg8[%c2, %c0_17] : memref<16x512xf32, #tpu.memory_space<vmem>>, vector<2x512xf32>
    %33 = arith.truncf %31 : vector<2x128xf32> to vector<2x128xbf16>
    %c0_18 = arith.constant 0 : index
    %c0_19 = arith.constant 0 : index
    %34 = vector.load %arg3[%c0_18, %c0_19] : memref<128x512xbf16, #tpu.memory_space<vmem>>, vector<128x512xbf16>
    %cst_20 = arith.constant dense<0.000000e+00> : vector<2x512xf32>
    %35 = tpu.matmul %33, %34, %cst_20 {dimension_numbers = #tpu.dot_dimension_numbers<[1], [0], [0], [1], [0, 0, 1, 1], [], []>} : vector<2x128xbf16>, vector<128x512xbf16>, vector<2x512xf32> -> vector<2x512xf32>
    %36 = arith.addf %32, %35 : vector<2x512xf32>
    %37 = vector.extract_strided_slice %36 {offsets = [0, 0], sizes = [2, 384], strides = [1, 1]} : vector<2x512xf32> to vector<2x384xf32>
    %cst_21 = arith.constant 5.000000e-01 : f32
    %38 = vector.broadcast %cst_21 : f32 to vector<2x384xf32>
    %39 = arith.mulf %38, %37 : vector<2x384xf32>
    %40 = math.tanh %39 : vector<2x384xf32>
    %cst_22 = arith.constant 5.000000e-01 : f32
    %41 = vector.broadcast %cst_22 : f32 to vector<2x384xf32>
    %42 = arith.mulf %41, %40 : vector<2x384xf32>
    %cst_23 = arith.constant 5.000000e-01 : f32
    %43 = vector.broadcast %cst_23 : f32 to vector<2x384xf32>
    %44 = arith.addf %42, %43 : vector<2x384xf32>
    %45 = vector.extract_strided_slice %44 {offsets = [0, 0], sizes = [2, 128], strides = [1, 1]} : vector<2x384xf32> to vector<2x128xf32>
    %46 = vector.extract_strided_slice %44 {offsets = [0, 128], sizes = [2, 128], strides = [1, 1]} : vector<2x384xf32> to vector<2x128xf32>
    %47 = vector.extract_strided_slice %44 {offsets = [0, 256], sizes = [2, 128], strides = [1, 1]} : vector<2x384xf32> to vector<2x128xf32>
    %48 = vector.extract_strided_slice %36 {offsets = [0, 384], sizes = [2, 128], strides = [1, 1]} : vector<2x512xf32> to vector<2x128xf32>
    %49 = math.tanh %48 : vector<2x128xf32>
    %50 = arith.mulf %46, %29 : vector<2x128xf32>
    %51 = arith.mulf %45, %49 : vector<2x128xf32>
    %52 = arith.addf %50, %51 : vector<2x128xf32>
    %53 = math.tanh %52 : vector<2x128xf32>
    %54 = arith.mulf %47, %53 : vector<2x128xf32>
    %c4 = arith.constant 4 : index
    %c0_24 = arith.constant 0 : index
    %55 = vector.load %arg8[%c4, %c0_24] : memref<16x512xf32, #tpu.memory_space<vmem>>, vector<2x512xf32>
    %56 = arith.truncf %54 : vector<2x128xf32> to vector<2x128xbf16>
    %c0_25 = arith.constant 0 : index
    %c0_26 = arith.constant 0 : index
    %57 = vector.load %arg3[%c0_25, %c0_26] : memref<128x512xbf16, #tpu.memory_space<vmem>>, vector<128x512xbf16>
    %cst_27 = arith.constant dense<0.000000e+00> : vector<2x512xf32>
    %58 = tpu.matmul %56, %57, %cst_27 {dimension_numbers = #tpu.dot_dimension_numbers<[1], [0], [0], [1], [0, 0, 1, 1], [], []>} : vector<2x128xbf16>, vector<128x512xbf16>, vector<2x512xf32> -> vector<2x512xf32>
    %59 = arith.addf %55, %58 : vector<2x512xf32>
    %60 = vector.extract_strided_slice %59 {offsets = [0, 0], sizes = [2, 384], strides = [1, 1]} : vector<2x512xf32> to vector<2x384xf32>
    %cst_28 = arith.constant 5.000000e-01 : f32
    %61 = vector.broadcast %cst_28 : f32 to vector<2x384xf32>
    %62 = arith.mulf %61, %60 : vector<2x384xf32>
    %63 = math.tanh %62 : vector<2x384xf32>
    %cst_29 = arith.constant 5.000000e-01 : f32
    %64 = vector.broadcast %cst_29 : f32 to vector<2x384xf32>
    %65 = arith.mulf %64, %63 : vector<2x384xf32>
    %cst_30 = arith.constant 5.000000e-01 : f32
    %66 = vector.broadcast %cst_30 : f32 to vector<2x384xf32>
    %67 = arith.addf %65, %66 : vector<2x384xf32>
    %68 = vector.extract_strided_slice %67 {offsets = [0, 0], sizes = [2, 128], strides = [1, 1]} : vector<2x384xf32> to vector<2x128xf32>
    %69 = vector.extract_strided_slice %67 {offsets = [0, 128], sizes = [2, 128], strides = [1, 1]} : vector<2x384xf32> to vector<2x128xf32>
    %70 = vector.extract_strided_slice %67 {offsets = [0, 256], sizes = [2, 128], strides = [1, 1]} : vector<2x384xf32> to vector<2x128xf32>
    %71 = vector.extract_strided_slice %59 {offsets = [0, 384], sizes = [2, 128], strides = [1, 1]} : vector<2x512xf32> to vector<2x128xf32>
    %72 = math.tanh %71 : vector<2x128xf32>
    %73 = arith.mulf %69, %52 : vector<2x128xf32>
    %74 = arith.mulf %68, %72 : vector<2x128xf32>
    %75 = arith.addf %73, %74 : vector<2x128xf32>
    %76 = math.tanh %75 : vector<2x128xf32>
    %77 = arith.mulf %70, %76 : vector<2x128xf32>
    %c6 = arith.constant 6 : index
    %c0_31 = arith.constant 0 : index
    %78 = vector.load %arg8[%c6, %c0_31] : memref<16x512xf32, #tpu.memory_space<vmem>>, vector<2x512xf32>
    %79 = arith.truncf %77 : vector<2x128xf32> to vector<2x128xbf16>
    %c0_32 = arith.constant 0 : index
    %c0_33 = arith.constant 0 : index
    %80 = vector.load %arg3[%c0_32, %c0_33] : memref<128x512xbf16, #tpu.memory_space<vmem>>, vector<128x512xbf16>
    %cst_34 = arith.constant dense<0.000000e+00> : vector<2x512xf32>
    %81 = tpu.matmul %79, %80, %cst_34 {dimension_numbers = #tpu.dot_dimension_numbers<[1], [0], [0], [1], [0, 0, 1, 1], [], []>} : vector<2x128xbf16>, vector<128x512xbf16>, vector<2x512xf32> -> vector<2x512xf32>
    %82 = arith.addf %78, %81 : vector<2x512xf32>
    %83 = vector.extract_strided_slice %82 {offsets = [0, 0], sizes = [2, 384], strides = [1, 1]} : vector<2x512xf32> to vector<2x384xf32>
    %cst_35 = arith.constant 5.000000e-01 : f32
    %84 = vector.broadcast %cst_35 : f32 to vector<2x384xf32>
    %85 = arith.mulf %84, %83 : vector<2x384xf32>
    %86 = math.tanh %85 : vector<2x384xf32>
    %cst_36 = arith.constant 5.000000e-01 : f32
    %87 = vector.broadcast %cst_36 : f32 to vector<2x384xf32>
    %88 = arith.mulf %87, %86 : vector<2x384xf32>
    %cst_37 = arith.constant 5.000000e-01 : f32
    %89 = vector.broadcast %cst_37 : f32 to vector<2x384xf32>
    %90 = arith.addf %88, %89 : vector<2x384xf32>
    %91 = vector.extract_strided_slice %90 {offsets = [0, 0], sizes = [2, 128], strides = [1, 1]} : vector<2x384xf32> to vector<2x128xf32>
    %92 = vector.extract_strided_slice %90 {offsets = [0, 128], sizes = [2, 128], strides = [1, 1]} : vector<2x384xf32> to vector<2x128xf32>
    %93 = vector.extract_strided_slice %90 {offsets = [0, 256], sizes = [2, 128], strides = [1, 1]} : vector<2x384xf32> to vector<2x128xf32>
    %94 = vector.extract_strided_slice %82 {offsets = [0, 384], sizes = [2, 128], strides = [1, 1]} : vector<2x512xf32> to vector<2x128xf32>
    %95 = math.tanh %94 : vector<2x128xf32>
    %96 = arith.mulf %92, %75 : vector<2x128xf32>
    %97 = arith.mulf %91, %95 : vector<2x128xf32>
    %98 = arith.addf %96, %97 : vector<2x128xf32>
    %99 = math.tanh %98 : vector<2x128xf32>
    %100 = arith.mulf %93, %99 : vector<2x128xf32>
    %c8 = arith.constant 8 : index
    %c0_38 = arith.constant 0 : index
    %101 = vector.load %arg8[%c8, %c0_38] : memref<16x512xf32, #tpu.memory_space<vmem>>, vector<2x512xf32>
    %102 = arith.truncf %100 : vector<2x128xf32> to vector<2x128xbf16>
    %c0_39 = arith.constant 0 : index
    %c0_40 = arith.constant 0 : index
    %103 = vector.load %arg3[%c0_39, %c0_40] : memref<128x512xbf16, #tpu.memory_space<vmem>>, vector<128x512xbf16>
    %cst_41 = arith.constant dense<0.000000e+00> : vector<2x512xf32>
    %104 = tpu.matmul %102, %103, %cst_41 {dimension_numbers = #tpu.dot_dimension_numbers<[1], [0], [0], [1], [0, 0, 1, 1], [], []>} : vector<2x128xbf16>, vector<128x512xbf16>, vector<2x512xf32> -> vector<2x512xf32>
    %105 = arith.addf %101, %104 : vector<2x512xf32>
    %106 = vector.extract_strided_slice %105 {offsets = [0, 0], sizes = [2, 384], strides = [1, 1]} : vector<2x512xf32> to vector<2x384xf32>
    %cst_42 = arith.constant 5.000000e-01 : f32
    %107 = vector.broadcast %cst_42 : f32 to vector<2x384xf32>
    %108 = arith.mulf %107, %106 : vector<2x384xf32>
    %109 = math.tanh %108 : vector<2x384xf32>
    %cst_43 = arith.constant 5.000000e-01 : f32
    %110 = vector.broadcast %cst_43 : f32 to vector<2x384xf32>
    %111 = arith.mulf %110, %109 : vector<2x384xf32>
    %cst_44 = arith.constant 5.000000e-01 : f32
    %112 = vector.broadcast %cst_44 : f32 to vector<2x384xf32>
    %113 = arith.addf %111, %112 : vector<2x384xf32>
    %114 = vector.extract_strided_slice %113 {offsets = [0, 0], sizes = [2, 128], strides = [1, 1]} : vector<2x384xf32> to vector<2x128xf32>
    %115 = vector.extract_strided_slice %113 {offsets = [0, 128], sizes = [2, 128], strides = [1, 1]} : vector<2x384xf32> to vector<2x128xf32>
    %116 = vector.extract_strided_slice %113 {offsets = [0, 256], sizes = [2, 128], strides = [1, 1]} : vector<2x384xf32> to vector<2x128xf32>
    %117 = vector.extract_strided_slice %105 {offsets = [0, 384], sizes = [2, 128], strides = [1, 1]} : vector<2x512xf32> to vector<2x128xf32>
    %118 = math.tanh %117 : vector<2x128xf32>
    %119 = arith.mulf %115, %98 : vector<2x128xf32>
    %120 = arith.mulf %114, %118 : vector<2x128xf32>
    %121 = arith.addf %119, %120 : vector<2x128xf32>
    %122 = math.tanh %121 : vector<2x128xf32>
    %123 = arith.mulf %116, %122 : vector<2x128xf32>
    %c10 = arith.constant 10 : index
    %c0_45 = arith.constant 0 : index
    %124 = vector.load %arg8[%c10, %c0_45] : memref<16x512xf32, #tpu.memory_space<vmem>>, vector<2x512xf32>
    %125 = arith.truncf %123 : vector<2x128xf32> to vector<2x128xbf16>
    %c0_46 = arith.constant 0 : index
    %c0_47 = arith.constant 0 : index
    %126 = vector.load %arg3[%c0_46, %c0_47] : memref<128x512xbf16, #tpu.memory_space<vmem>>, vector<128x512xbf16>
    %cst_48 = arith.constant dense<0.000000e+00> : vector<2x512xf32>
    %127 = tpu.matmul %125, %126, %cst_48 {dimension_numbers = #tpu.dot_dimension_numbers<[1], [0], [0], [1], [0, 0, 1, 1], [], []>} : vector<2x128xbf16>, vector<128x512xbf16>, vector<2x512xf32> -> vector<2x512xf32>
    %128 = arith.addf %124, %127 : vector<2x512xf32>
    %129 = vector.extract_strided_slice %128 {offsets = [0, 0], sizes = [2, 384], strides = [1, 1]} : vector<2x512xf32> to vector<2x384xf32>
    %cst_49 = arith.constant 5.000000e-01 : f32
    %130 = vector.broadcast %cst_49 : f32 to vector<2x384xf32>
    %131 = arith.mulf %130, %129 : vector<2x384xf32>
    %132 = math.tanh %131 : vector<2x384xf32>
    %cst_50 = arith.constant 5.000000e-01 : f32
    %133 = vector.broadcast %cst_50 : f32 to vector<2x384xf32>
    %134 = arith.mulf %133, %132 : vector<2x384xf32>
    %cst_51 = arith.constant 5.000000e-01 : f32
    %135 = vector.broadcast %cst_51 : f32 to vector<2x384xf32>
    %136 = arith.addf %134, %135 : vector<2x384xf32>
    %137 = vector.extract_strided_slice %136 {offsets = [0, 0], sizes = [2, 128], strides = [1, 1]} : vector<2x384xf32> to vector<2x128xf32>
    %138 = vector.extract_strided_slice %136 {offsets = [0, 128], sizes = [2, 128], strides = [1, 1]} : vector<2x384xf32> to vector<2x128xf32>
    %139 = vector.extract_strided_slice %136 {offsets = [0, 256], sizes = [2, 128], strides = [1, 1]} : vector<2x384xf32> to vector<2x128xf32>
    %140 = vector.extract_strided_slice %128 {offsets = [0, 384], sizes = [2, 128], strides = [1, 1]} : vector<2x512xf32> to vector<2x128xf32>
    %141 = math.tanh %140 : vector<2x128xf32>
    %142 = arith.mulf %138, %121 : vector<2x128xf32>
    %143 = arith.mulf %137, %141 : vector<2x128xf32>
    %144 = arith.addf %142, %143 : vector<2x128xf32>
    %145 = math.tanh %144 : vector<2x128xf32>
    %146 = arith.mulf %139, %145 : vector<2x128xf32>
    %c12 = arith.constant 12 : index
    %c0_52 = arith.constant 0 : index
    %147 = vector.load %arg8[%c12, %c0_52] : memref<16x512xf32, #tpu.memory_space<vmem>>, vector<2x512xf32>
    %148 = arith.truncf %146 : vector<2x128xf32> to vector<2x128xbf16>
    %c0_53 = arith.constant 0 : index
    %c0_54 = arith.constant 0 : index
    %149 = vector.load %arg3[%c0_53, %c0_54] : memref<128x512xbf16, #tpu.memory_space<vmem>>, vector<128x512xbf16>
    %cst_55 = arith.constant dense<0.000000e+00> : vector<2x512xf32>
    %150 = tpu.matmul %148, %149, %cst_55 {dimension_numbers = #tpu.dot_dimension_numbers<[1], [0], [0], [1], [0, 0, 1, 1], [], []>} : vector<2x128xbf16>, vector<128x512xbf16>, vector<2x512xf32> -> vector<2x512xf32>
    %151 = arith.addf %147, %150 : vector<2x512xf32>
    %152 = vector.extract_strided_slice %151 {offsets = [0, 0], sizes = [2, 384], strides = [1, 1]} : vector<2x512xf32> to vector<2x384xf32>
    %cst_56 = arith.constant 5.000000e-01 : f32
    %153 = vector.broadcast %cst_56 : f32 to vector<2x384xf32>
    %154 = arith.mulf %153, %152 : vector<2x384xf32>
    %155 = math.tanh %154 : vector<2x384xf32>
    %cst_57 = arith.constant 5.000000e-01 : f32
    %156 = vector.broadcast %cst_57 : f32 to vector<2x384xf32>
    %157 = arith.mulf %156, %155 : vector<2x384xf32>
    %cst_58 = arith.constant 5.000000e-01 : f32
    %158 = vector.broadcast %cst_58 : f32 to vector<2x384xf32>
    %159 = arith.addf %157, %158 : vector<2x384xf32>
    %160 = vector.extract_strided_slice %159 {offsets = [0, 0], sizes = [2, 128], strides = [1, 1]} : vector<2x384xf32> to vector<2x128xf32>
    %161 = vector.extract_strided_slice %159 {offsets = [0, 128], sizes = [2, 128], strides = [1, 1]} : vector<2x384xf32> to vector<2x128xf32>
    %162 = vector.extract_strided_slice %159 {offsets = [0, 256], sizes = [2, 128], strides = [1, 1]} : vector<2x384xf32> to vector<2x128xf32>
    %163 = vector.extract_strided_slice %151 {offsets = [0, 384], sizes = [2, 128], strides = [1, 1]} : vector<2x512xf32> to vector<2x128xf32>
    %164 = math.tanh %163 : vector<2x128xf32>
    %165 = arith.mulf %161, %144 : vector<2x128xf32>
    %166 = arith.mulf %160, %164 : vector<2x128xf32>
    %167 = arith.addf %165, %166 : vector<2x128xf32>
    %168 = math.tanh %167 : vector<2x128xf32>
    %169 = arith.mulf %162, %168 : vector<2x128xf32>
    %c14 = arith.constant 14 : index
    %c0_59 = arith.constant 0 : index
    %170 = vector.load %arg8[%c14, %c0_59] : memref<16x512xf32, #tpu.memory_space<vmem>>, vector<2x512xf32>
    %171 = arith.truncf %169 : vector<2x128xf32> to vector<2x128xbf16>
    %c0_60 = arith.constant 0 : index
    %c0_61 = arith.constant 0 : index
    %172 = vector.load %arg3[%c0_60, %c0_61] : memref<128x512xbf16, #tpu.memory_space<vmem>>, vector<128x512xbf16>
    %cst_62 = arith.constant dense<0.000000e+00> : vector<2x512xf32>
    %173 = tpu.matmul %171, %172, %cst_62 {dimension_numbers = #tpu.dot_dimension_numbers<[1], [0], [0], [1], [0, 0, 1, 1], [], []>} : vector<2x128xbf16>, vector<128x512xbf16>, vector<2x512xf32> -> vector<2x512xf32>
    %174 = arith.addf %170, %173 : vector<2x512xf32>
    %175 = vector.extract_strided_slice %174 {offsets = [0, 0], sizes = [2, 384], strides = [1, 1]} : vector<2x512xf32> to vector<2x384xf32>
    %cst_63 = arith.constant 5.000000e-01 : f32
    %176 = vector.broadcast %cst_63 : f32 to vector<2x384xf32>
    %177 = arith.mulf %176, %175 : vector<2x384xf32>
    %178 = math.tanh %177 : vector<2x384xf32>
    %cst_64 = arith.constant 5.000000e-01 : f32
    %179 = vector.broadcast %cst_64 : f32 to vector<2x384xf32>
    %180 = arith.mulf %179, %178 : vector<2x384xf32>
    %cst_65 = arith.constant 5.000000e-01 : f32
    %181 = vector.broadcast %cst_65 : f32 to vector<2x384xf32>
    %182 = arith.addf %180, %181 : vector<2x384xf32>
    %183 = vector.extract_strided_slice %182 {offsets = [0, 0], sizes = [2, 128], strides = [1, 1]} : vector<2x384xf32> to vector<2x128xf32>
    %184 = vector.extract_strided_slice %182 {offsets = [0, 128], sizes = [2, 128], strides = [1, 1]} : vector<2x384xf32> to vector<2x128xf32>
    %185 = vector.extract_strided_slice %182 {offsets = [0, 256], sizes = [2, 128], strides = [1, 1]} : vector<2x384xf32> to vector<2x128xf32>
    %186 = vector.extract_strided_slice %174 {offsets = [0, 384], sizes = [2, 128], strides = [1, 1]} : vector<2x512xf32> to vector<2x128xf32>
    %187 = math.tanh %186 : vector<2x128xf32>
    %188 = arith.mulf %184, %167 : vector<2x128xf32>
    %189 = arith.mulf %183, %187 : vector<2x128xf32>
    %190 = arith.addf %188, %189 : vector<2x128xf32>
    %191 = math.tanh %190 : vector<2x128xf32>
    %192 = arith.mulf %185, %191 : vector<2x128xf32>
    %193 = arith.truncf %192 : vector<2x128xf32> to vector<2x128xbf16>
    %c0_66 = arith.constant 0 : index
    %c0_67 = arith.constant 0 : index
    %194 = vector.load %arg4[%c0_66, %c0_67] : memref<128x128xbf16, #tpu.memory_space<vmem>>, vector<128x128xbf16>
    %cst_68 = arith.constant dense<0.000000e+00> : vector<2x128xf32>
    %195 = tpu.matmul %193, %194, %cst_68 {dimension_numbers = #tpu.dot_dimension_numbers<[1], [0], [0], [1], [0, 0, 1, 1], [], []>} : vector<2x128xbf16>, vector<128x128xbf16>, vector<2x128xf32> -> vector<2x128xf32>
    %c0_69 = arith.constant 0 : index
    %c0_70 = arith.constant 0 : index
    %196 = vector.load %arg5[%c0_69, %c0_70] : memref<1x128xf32, #tpu.memory_space<vmem>>, vector<1x128xf32>
    %197 = vector.broadcast %196 : vector<1x128xf32> to vector<2x128xf32>
    %198 = arith.addf %195, %197 : vector<2x128xf32>
    %c0_71 = arith.constant 0 : index
    %c0_72 = arith.constant 0 : index
    %199 = vector.load %arg6[%c0_71, %c0_72] : memref<2x128xf32, #tpu.memory_space<vmem>>, vector<2x128xf32>
    tpu.vector_store %arg6[%c0_71, %c0_72], %198 {strides = array<i32>} : memref<2x128xf32, #tpu.memory_space<vmem>>, vector<2x128xf32>,
    %c0_73 = arith.constant 0 : index
    %c0_74 = arith.constant 0 : index
    %200 = vector.load %arg7[%c0_73, %c0_74] : memref<2x256xf32, #tpu.memory_space<vmem>>, vector<2x128xf32>
    tpu.vector_store %arg7[%c0_73, %c0_74], %192 {strides = array<i32>} : memref<2x256xf32, #tpu.memory_space<vmem>>, vector<2x128xf32>,
    %c0_75 = arith.constant 0 : index
    %c128 = arith.constant 128 : index
    %201 = vector.load %arg7[%c0_75, %c128] : memref<2x256xf32, #tpu.memory_space<vmem>>, vector<2x128xf32>
    tpu.vector_store %arg7[%c0_75, %c128], %190 {strides = array<i32>} : memref<2x256xf32, #tpu.memory_space<vmem>>, vector<2x128xf32>,
    return
  }
}

</mosaic_0001>

<llo_original>
// kernel: tpu_custom_call.1
$region0: #{tpu_custom_call.1}
  #allocation0 [shape = 'u32[]', space=smem, size = 0x4, offset = 0x4, fixed_abs, tag = 'smem constant byte address 0x4 - core index']
  #allocation1 [shape = 'u32[72,128]{1,0:T(1,128)}', space=vmem, size = 0x9000, scoped, tag = 'internal scratch']
  #allocation2 [shape = 'f32[16,512]{1,0:T(8,128)}', space=vmem, size = 0x8000, scoped, tag = 'scratch operand']
  %s0 = inlined_call_operand.hbm [shape: bf16[16,16], index: 0, kind: input, shape index: {}]
  %s1 = inlined_call_operand.hbm [shape: bf16[16,512], index: 1, kind: input, shape index: {}]
  %s2 = inlined_call_operand.hbm [shape: f32[1,512], index: 2, kind: input, shape index: {}]
  %s3 = inlined_call_operand.hbm [shape: bf16[128,512], index: 3, kind: input, shape index: {}]
  %s4 = inlined_call_operand.hbm [shape: bf16[128,128], index: 4, kind: input, shape index: {}]
  %s5 = inlined_call_operand.vmem [shape: f32[1,128], index: 5, kind: input, shape index: {}]
  %s6 = inlined_call_operand.hbm [shape: f32[2,128], index: 6, kind: output, shape index: {0}]
  %s7 = inlined_call_operand.hbm [shape: f32[2,256], index: 7, kind: output, shape index: {1}]
  %8 = xla_tuple %s6, %s7
  %s9 = sld [smem:[#allocation0]]
  $region62: #{tpu_custom_call.1} parent=0
    _
  %s11 = ssub.s32 1, %s9
  %s12 = scalar_select 0, %s11, %s9
  $region1: #{tpu_custom_call.1} parent=0
    #allocation3 [shape = 'u8[4096]{0}', space=vmem, size = 0x1000, scoped, tag = 'input window, operand 0, single buffered']
    #allocation4 [shape = 's32[1]{0}', space=sflag, size = 0x4, scoped, tag = 'scoped memory for tpu_custom_call.1']
    #allocation5 [shape = 's32[1]{0}', space=sflag, size = 0x4, scoped, tag = 'scoped memory for tpu_custom_call.1']
    #allocation6 [shape = 'u8[16384]{0}', space=vmem, size = 0x4000, scoped, tag = 'input window, operand 1, single buffered']
    #allocation7 [shape = 's32[1]{0}', space=sflag, size = 0x4, scoped, tag = 'scoped memory for tpu_custom_call.1']
    #allocation8 [shape = 'u8[2048]{0}', space=vmem, size = 0x800, scoped, tag = 'input window, operand 2, single buffered']
    #allocation9 [shape = 'u8[131072]{0}', space=vmem, size = 0x20000, scoped, tag = 'input window, operand 3, single buffered']
    #allocation10 [shape = 's32[1]{0}', space=sflag, size = 0x4, scoped, tag = 'scoped memory for tpu_custom_call.1']
    #allocation11 [shape = 'u8[32768]{0}', space=vmem, size = 0x8000, scoped, tag = 'input window, operand 4, single buffered']
    #allocation12 [shape = 'u8[1024]{0}', space=vmem, size = 0x400, scoped, tag = 'output window, operand 0, single buffered']
    #allocation13 [shape = 'u8[2048]{0}', space=vmem, size = 0x800, scoped, tag = 'output window, operand 1, single buffered']
    #allocation14 [shape = 's32[1]{0}', space=sflag, size = 0x4, scoped, tag = 'scoped memory for tpu_custom_call.1']
    %13 = vsyncpa [#allocation4], 0
    %14 = vsyncpa [#allocation7], 0
    %15 = vsyncpa [#allocation10], 0
    %16 = vsyncpa [#allocation5], 0
    %17 = vsyncpa [#allocation14], 0
    // Predicated region
    $region2: #{tpu_custom_call.1} parent=1 // pred_check
      _
    $region3: #{tpu_custom_call.1} parent=1 // pred_check_branch
      %19 = sbr.rel (0) target = $region5
    $region4: #{tpu_custom_call.1} parent=1 // pred_region
      %21 = vsyncadd [#allocation4], 0
      %s22 = sshll.u32 %s0, 4
      %s23 = int_to_ptr.hbm [resolvable:$true] %s22
      %s24 = sshll.u32 [#allocation3], 4
      %s25 = int_to_ptr.vmem [resolvable:$true] %s24
      %30 = dma.hbm_to_vmem [thread:$0]  %s23, 128, %s25, [#allocation4], 64, 64, 4
    $region5: #{tpu_custom_call.1} parent=1 // pred_fallthru
      _
    // Predicated region
    $region6: #{tpu_custom_call.1} parent=1 // pred_check
      _
    $region7: #{tpu_custom_call.1} parent=1 // pred_check_branch
      %32 = sbr.rel (0) target = $region9
    $region8: #{tpu_custom_call.1} parent=1 // pred_region
      %34 = vsyncadd [#allocation7], 0
      %s35 = sshll.u32 %s1, 4
      %s36 = int_to_ptr.hbm [resolvable:$true] %s35
      %s37 = sshll.u32 [#allocation6], 4
      %s38 = int_to_ptr.vmem [resolvable:$true] %s37
      %43 = dma.hbm_to_vmem [thread:$0]  %s36, 512, %s38, [#allocation7], 256, 256, 16
    $region9: #{tpu_custom_call.1} parent=1 // pred_fallthru
      _
    // Predicated region
    $region10: #{tpu_custom_call.1} parent=1 // pred_check
      _
    $region11: #{tpu_custom_call.1} parent=1 // pred_check_branch
      %45 = sbr.rel (0) target = $region13
    $region12: #{tpu_custom_call.1} parent=1 // pred_region
      %47 = vsyncadd [#allocation7], 0
      %s49 = sshll.u32 %s2, 4
      %s50 = int_to_ptr.hbm [resolvable:$true] %s49
      %s51 = sshll.u32 [#allocation8], 4
      %s52 = int_to_ptr.vmem [resolvable:$true] %s51
      %54 = dma.hbm_to_vmem [thread:$0]  %s50, 64, %s52, [#allocation7]
    $region13: #{tpu_custom_call.1} parent=1 // pred_fallthru
      _
    // Predicated region
    $region14: #{tpu_custom_call.1} parent=1 // pred_check
      _
    $region15: #{tpu_custom_call.1} parent=1 // pred_check_branch
      %56 = sbr.rel (0) target = $region17
    $region16: #{tpu_custom_call.1} parent=1 // pred_region
      %58 = vsyncadd [#allocation10], 0
      %s59 = sshll.u32 %s3, 4
      %s60 = int_to_ptr.hbm [resolvable:$true] %s59
      %s61 = sshll.u32 [#allocation9], 4
      %s62 = int_to_ptr.vmem [resolvable:$true] %s61
      %67 = dma.hbm_to_vmem [thread:$0]  %s60, 4096, %s62, [#allocation10], 256, 256, 16
    $region17: #{tpu_custom_call.1} parent=1 // pred_fallthru
      _
    // Predicated region
    $region18: #{tpu_custom_call.1} parent=1 // pred_check
      _
    $region19: #{tpu_custom_call.1} parent=1 // pred_check_branch
      %69 = sbr.rel (0) target = $region21
    $region20: #{tpu_custom_call.1} parent=1 // pred_region
      %71 = vsyncadd [#allocation10], 0
      %s72 = sshll.u32 %s4, 4
      %s73 = int_to_ptr.hbm [resolvable:$true] %s72
      %s74 = sshll.u32 [#allocation11], 4
      %s75 = int_to_ptr.vmem [resolvable:$true] %s74
      %80 = dma.hbm_to_vmem [thread:$0]  %s73, 1024, %s75, [#allocation10], 64, 64, 4
    $region21: #{tpu_custom_call.1} parent=1 // pred_fallthru
      _
    // Predicated region
    $region22: #{tpu_custom_call.1} parent=1 // pred_check
      _
    $region23: #{tpu_custom_call.1} parent=1 // pred_check_branch
      %82 = sbr.rel (0) target = $region25
    $region24: #{tpu_custom_call.1} parent=1 // pred_region
      _
    $region25: #{tpu_custom_call.1} parent=1 // pred_fallthru
      _
    // Predicated region
    $region26: #{tpu_custom_call.1} parent=1 // pred_check
      _
    $region27: #{tpu_custom_call.1} parent=1 // pred_check_branch
      %84 = sbr.rel (0) target = $region29
    $region28: #{tpu_custom_call.1} parent=1 // pred_region
      %86 = dma.done [#allocation4], 128
    $region29: #{tpu_custom_call.1} parent=1 // pred_fallthru
      _
    // Predicated region
    $region30: #{tpu_custom_call.1} parent=1 // pred_check
      _
    $region31: #{tpu_custom_call.1} parent=1 // pred_check_branch
      %88 = sbr.rel (0) target = $region33
    $region32: #{tpu_custom_call.1} parent=1 // pred_region
      %90 = dma.done [#allocation7], 512
    $region33: #{tpu_custom_call.1} parent=1 // pred_fallthru
      _
    // Predicated region
    $region34: #{tpu_custom_call.1} parent=1 // pred_check
      _
    $region35: #{tpu_custom_call.1} parent=1 // pred_check_branch
      %92 = sbr.rel (0) target = $region37
    $region36: #{tpu_custom_call.1} parent=1 // pred_region
      %94 = dma.done [#allocation7], 64
    $region37: #{tpu_custom_call.1} parent=1 // pred_fallthru
      _
    // Predicated region
    $region38: #{tpu_custom_call.1} parent=1 // pred_check
      _
    $region39: #{tpu_custom_call.1} parent=1 // pred_check_branch
      %96 = sbr.rel (0) target = $region41
    $region40: #{tpu_custom_call.1} parent=1 // pred_region
      %98 = dma.done [#allocation10], 4096
    $region41: #{tpu_custom_call.1} parent=1 // pred_fallthru
      _
    // Predicated region
    $region42: #{tpu_custom_call.1} parent=1 // pred_check
      _
    $region43: #{tpu_custom_call.1} parent=1 // pred_check_branch
      %100 = sbr.rel (0) target = $region45
    $region44: #{tpu_custom_call.1} parent=1 // pred_region
      %102 = dma.done [#allocation10], 1024
    $region45: #{tpu_custom_call.1} parent=1 // pred_fallthru
      _
    %v104 = vld [vmem:[#allocation3] sm:$0xf]
    %v105 = vld [vmem:[#allocation3 + $0x4] sm:$0xf]
    %v106 = vld [vmem:[#allocation6] sm:$0xff]
    %v107 = vld [vmem:[#allocation6 + $0x8] sm:$0xff]
    %v108 = vld [vmem:[#allocation6 + $0x10] sm:$0xff]
    %v109 = vld [vmem:[#allocation6 + $0x18] sm:$0xff]
    %v110 = vld [vmem:[#allocation8] sm:$0xf]
    %v112 = vperm.slane %v110, 0
    %v113 = vperm.slane %v110, 1
    %v114 = vperm.slane %v110, 2
    %v115 = vperm.slane %v110, 3
    %v122 = vunpack.c.l.b16 %v104
    %v123 = vunpack.c.l.b16 %v105
    %v124 = vpack.c.b16 %v123, %v122
    %v129 = vunpack.c.l.b16 %v106
    %v130 = vunpack.c.h.b16 %v106
    %v131 = vunpack.c.l.b16 %v107
    %v132 = vunpack.c.h.b16 %v107
    %v133 = vunpack.c.l.b16 %v108
    %v134 = vunpack.c.h.b16 %v108
    %v135 = vunpack.c.l.b16 %v109
    %v136 = vunpack.c.h.b16 %v109
    %v137 = vpack.c.b16 %v133, %v129
    %v138 = vpack.c.b16 %v134, %v130
    %v139 = vpack.c.b16 %v135, %v131
    %v140 = vpack.c.b16 %v136, %v132
    %vm145 = vcmask 130048
    %v147 = vsel %vm145, %v124, 0
    %149 = vmatpush.bf16.msra.mxu0 0
    %150 = vmatpush.bf16.msra.mxu0 0
    %151 = vmatpush.bf16.msra.mxu0 0
    %152 = vmatpush.bf16.msra.mxu0 0
    %153 = vmatpush.bf16.msra.mxu0 0
    %154 = vmatpush.bf16.msra.mxu0 0
    %155 = vmatpush.bf16.msra.mxu0 0
    %156 = vmatpush.bf16.msra.mxu0 %v137
    %157 = vmatmul.bf16.gmra.mxu0 %v147
    %v158 = vpop.f32.mrf.mxu0
    %v159 = vadd.f32 %v112, %v158
    %v160 = vpop.f32.mrf.mxu0
    %v161 = vadd.f32 %v112, %v160
    %162 = vdwg.mxu0
    %163 = vmatpush.bf16.msra.mxu0 0
    %164 = vmatpush.bf16.msra.mxu0 0
    %165 = vmatpush.bf16.msra.mxu0 0
    %166 = vmatpush.bf16.msra.mxu0 0
    %167 = vmatpush.bf16.msra.mxu0 0
    %168 = vmatpush.bf16.msra.mxu0 0
    %169 = vmatpush.bf16.msra.mxu0 0
    %170 = vmatpush.bf16.msra.mxu0 %v138
    %171 = vmatmul.bf16.gmra.mxu0 %v147
    %v172 = vpop.f32.mrf.mxu0
    %v173 = vadd.f32 %v113, %v172
    %v174 = vpop.f32.mrf.mxu0
    %v175 = vadd.f32 %v113, %v174
    %176 = vdwg.mxu0
    %177 = vmatpush.bf16.msra.mxu0 0
    %178 = vmatpush.bf16.msra.mxu0 0
    %179 = vmatpush.bf16.msra.mxu0 0
    %180 = vmatpush.bf16.msra.mxu0 0
    %181 = vmatpush.bf16.msra.mxu0 0
    %182 = vmatpush.bf16.msra.mxu0 0
    %183 = vmatpush.bf16.msra.mxu0 0
    %184 = vmatpush.bf16.msra.mxu0 %v139
    %185 = vmatmul.bf16.gmra.mxu0 %v147
    %v186 = vpop.f32.mrf.mxu0
    %v187 = vadd.f32 %v114, %v186
    %v188 = vpop.f32.mrf.mxu0
    %v189 = vadd.f32 %v114, %v188
    %190 = vdwg.mxu0
    %191 = vmatpush.bf16.msra.mxu0 0
    %192 = vmatpush.bf16.msra.mxu0 0
    %193 = vmatpush.bf16.msra.mxu0 0
    %194 = vmatpush.bf16.msra.mxu0 0
    %195 = vmatpush.bf16.msra.mxu0 0
    %196 = vmatpush.bf16.msra.mxu0 0
    %197 = vmatpush.bf16.msra.mxu0 0
    %198 = vmatpush.bf16.msra.mxu0 %v140
    %199 = vmatmul.bf16.gmra.mxu0 %v147
    %v200 = vpop.f32.mrf.mxu0
    %v201 = vadd.f32 %v115, %v200
    %v202 = vpop.f32.mrf.mxu0
    %v203 = vadd.f32 %v115, %v202
    %204 = vdwg.mxu0
    %205 = vst [vmem:[#allocation2] sm:$0xff] %v159
    %206 = vst [vmem:[#allocation2 + $0x8] sm:$0xff] %v173
    %207 = vst [vmem:[#allocation2 + $0x10] sm:$0xff] %v187
    %208 = vst [vmem:[#allocation2 + $0x18] sm:$0xff] %v201
    %209 = vst [vmem:[#allocation2 + $0x20] sm:$0xff] %v161
    %210 = vst [vmem:[#allocation2 + $0x28] sm:$0xff] %v175
    %211 = vst [vmem:[#allocation2 + $0x30] sm:$0xff] %v189
    %212 = vst [vmem:[#allocation2 + $0x38] sm:$0xff] %v203
    %v213 = vld [vmem:[#allocation2] sm:$0x3]
    %v214 = vld [vmem:[#allocation2 + $0x8] sm:$0x3]
    %v215 = vld [vmem:[#allocation2 + $0x10] sm:$0x3]
    %v216 = vld [vmem:[#allocation2 + $0x18] sm:$0x3]
    %v217 = vld [vmem:[#allocation9] sm:$0xff]
    %v218 = vld [vmem:[#allocation9 + $0x8] sm:$0xff]
    %v219 = vld [vmem:[#allocation9 + $0x10] sm:$0xff]
    %v220 = vld [vmem:[#allocation9 + $0x18] sm:$0xff]
    %v221 = vld [vmem:[#allocation9 + $0x20] sm:$0xff]
    %v222 = vld [vmem:[#allocation9 + $0x28] sm:$0xff]
    %v223 = vld [vmem:[#allocation9 + $0x30] sm:$0xff]
    %v224 = vld [vmem:[#allocation9 + $0x38] sm:$0xff]
    %v225 = vld [vmem:[#allocation9 + $0x40] sm:$0xff]
    %v226 = vld [vmem:[#allocation9 + $0x48] sm:$0xff]
    %v227 = vld [vmem:[#allocation9 + $0x50] sm:$0xff]
    %v228 = vld [vmem:[#allocation9 + $0x58] sm:$0xff]
    %v229 = vld [vmem:[#allocation9 + $0x60] sm:$0xff]
    %v230 = vld [vmem:[#allocation9 + $0x68] sm:$0xff]
    %v231 = vld [vmem:[#allocation9 + $0x70] sm:$0xff]
    %v232 = vld [vmem:[#allocation9 + $0x78] sm:$0xff]
    %v233 = vld [vmem:[#allocation9 + $0x80] sm:$0xff]
    %v234 = vld [vmem:[#allocation9 + $0x88] sm:$0xff]
    %v235 = vld [vmem:[#allocation9 + $0x90] sm:$0xff]
    %v236 = vld [vmem:[#allocation9 + $0x98] sm:$0xff]
    %v237 = vld [vmem:[#allocation9 + $0xa0] sm:$0xff]
    %v238 = vld [vmem:[#allocation9 + $0xa8] sm:$0xff]
    %v239 = vld [vmem:[#allocation9 + $0xb0] sm:$0xff]
    %v240 = vld [vmem:[#allocation9 + $0xb8] sm:$0xff]
    %v241 = vld [vmem:[#allocation9 + $0xc0] sm:$0xff]
    %v242 = vld [vmem:[#allocation9 + $0xc8] sm:$0xff]
    %v243 = vld [vmem:[#allocation9 + $0xd0] sm:$0xff]
    %v244 = vld [vmem:[#allocation9 + $0xd8] sm:$0xff]
    %v245 = vld [vmem:[#allocation9 + $0xe0] sm:$0xff]
    %v246 = vld [vmem:[#allocation9 + $0xe8] sm:$0xff]
    %v247 = vld [vmem:[#allocation9 + $0xf0] sm:$0xff]
    %v248 = vld [vmem:[#allocation9 + $0xf8] sm:$0xff]
    %v281 = vunpack.c.l.b16 %v217
    %v282 = vunpack.c.h.b16 %v217
    %v283 = vunpack.c.l.b16 %v218
    %v284 = vunpack.c.h.b16 %v218
    %v285 = vunpack.c.l.b16 %v219
    %v286 = vunpack.c.h.b16 %v219
    %v287 = vunpack.c.l.b16 %v220
    %v288 = vunpack.c.h.b16 %v220
    %v289 = vunpack.c.l.b16 %v221
    %v290 = vunpack.c.h.b16 %v221
    %v291 = vunpack.c.l.b16 %v222
    %v292 = vunpack.c.h.b16 %v222
    %v293 = vunpack.c.l.b16 %v223
    %v294 = vunpack.c.h.b16 %v223
    %v295 = vunpack.c.l.b16 %v224
    %v296 = vunpack.c.h.b16 %v224
    %v297 = vunpack.c.l.b16 %v225
    %v298 = vunpack.c.h.b16 %v225
    %v299 = vunpack.c.l.b16 %v226
    %v300 = vunpack.c.h.b16 %v226
    %v301 = vunpack.c.l.b16 %v227
    %v302 = vunpack.c.h.b16 %v227
    %v303 = vunpack.c.l.b16 %v228
    %v304 = vunpack.c.h.b16 %v228
    %v305 = vunpack.c.l.b16 %v229
    %v306 = vunpack.c.h.b16 %v229
    %v307 = vunpack.c.l.b16 %v230
    %v308 = vunpack.c.h.b16 %v230
    %v309 = vunpack.c.l.b16 %v231
    %v310 = vunpack.c.h.b16 %v231
    %v311 = vunpack.c.l.b16 %v232
    %v312 = vunpack.c.h.b16 %v232
    %v313 = vunpack.c.l.b16 %v233
    %v314 = vunpack.c.h.b16 %v233
    %v315 = vunpack.c.l.b16 %v234
    %v316 = vunpack.c.h.b16 %v234
    %v317 = vunpack.c.l.b16 %v235
    %v318 = vunpack.c.h.b16 %v235
    %v319 = vunpack.c.l.b16 %v236
    %v320 = vunpack.c.h.b16 %v236
    %v321 = vunpack.c.l.b16 %v237
    %v322 = vunpack.c.h.b16 %v237
    %v323 = vunpack.c.l.b16 %v238
    %v324 = vunpack.c.h.b16 %v238
    %v325 = vunpack.c.l.b16 %v239
    %v326 = vunpack.c.h.b16 %v239
    %v327 = vunpack.c.l.b16 %v240
    %v328 = vunpack.c.h.b16 %v240
    %v329 = vunpack.c.l.b16 %v241
    %v330 = vunpack.c.h.b16 %v241
    %v331 = vunpack.c.l.b16 %v242
    %v332 = vunpack.c.h.b16 %v242
    %v333 = vunpack.c.l.b16 %v243
    %v334 = vunpack.c.h.b16 %v243
    %v335 = vunpack.c.l.b16 %v244
    %v336 = vunpack.c.h.b16 %v244
    %v337 = vunpack.c.l.b16 %v245
    %v338 = vunpack.c.h.b16 %v245
    %v339 = vunpack.c.l.b16 %v246
    %v340 = vunpack.c.h.b16 %v246
    %v341 = vunpack.c.l.b16 %v247
    %v342 = vunpack.c.h.b16 %v247
    %v343 = vunpack.c.l.b16 %v248
    %v344 = vunpack.c.h.b16 %v248
    %v345 = vpack.c.b16 %v285, %v281
    %v346 = vpack.c.b16 %v286, %v282
    %v347 = vpack.c.b16 %v287, %v283
    %v348 = vpack.c.b16 %v288, %v284
    %v349 = vpack.c.b16 %v293, %v289
    %v350 = vpack.c.b16 %v294, %v290
    %v351 = vpack.c.b16 %v295, %v291
    %v352 = vpack.c.b16 %v296, %v292
    %v353 = vpack.c.b16 %v301, %v297
    %v354 = vpack.c.b16 %v302, %v298
    %v355 = vpack.c.b16 %v303, %v299
    %v356 = vpack.c.b16 %v304, %v300
    %v357 = vpack.c.b16 %v309, %v305
    %v358 = vpack.c.b16 %v310, %v306
    %v359 = vpack.c.b16 %v311, %v307
    %v360 = vpack.c.b16 %v312, %v308
    %v361 = vpack.c.b16 %v317, %v313
    %v362 = vpack.c.b16 %v318, %v314
    %v363 = vpack.c.b16 %v319, %v315
    %v364 = vpack.c.b16 %v320, %v316
    %v365 = vpack.c.b16 %v325, %v321
    %v366 = vpack.c.b16 %v326, %v322
    %v367 = vpack.c.b16 %v327, %v323
    %v368 = vpack.c.b16 %v328, %v324
    %v369 = vpack.c.b16 %v333, %v329
    %v370 = vpack.c.b16 %v334, %v330
    %v371 = vpack.c.b16 %v335, %v331
    %v372 = vpack.c.b16 %v336, %v332
    %v373 = vpack.c.b16 %v341, %v337
    %v374 = vpack.c.b16 %v342, %v338
    %v375 = vpack.c.b16 %v343, %v339
    %v376 = vpack.c.b16 %v344, %v340
    %409 = vmatpush.bf16.msra.mxu0 %v373
    %410 = vmatpush.bf16.msra.mxu0 %v369
    %411 = vmatpush.bf16.msra.mxu0 %v365
    %412 = vmatpush.bf16.msra.mxu0 %v361
    %413 = vmatpush.bf16.msra.mxu0 %v357
    %414 = vmatpush.bf16.msra.mxu0 %v353
    %415 = vmatpush.bf16.msra.mxu0 %v349
    %416 = vmatpush.bf16.msra.mxu0 %v345
    %417 = vmatmul.bf16.gmra.mxu0 0
    %v418 = vpop.f32.mrf.mxu0
    %v419 = vadd.f32 0.0, %v418
    %v420 = vpop.f32.mrf.mxu0
    %421 = vdwg.mxu0
    %422 = vmatpush.bf16.msra.mxu0 %v374
    %423 = vmatpush.bf16.msra.mxu0 %v370
    %424 = vmatpush.bf16.msra.mxu0 %v366
    %425 = vmatpush.bf16.msra.mxu0 %v362
    %426 = vmatpush.bf16.msra.mxu0 %v358
    %427 = vmatpush.bf16.msra.mxu0 %v354
    %428 = vmatpush.bf16.msra.mxu0 %v350
    %429 = vmatpush.bf16.msra.mxu0 %v346
    %430 = vmatmul.bf16.gmra.mxu0 0
    %v431 = vpop.f32.mrf.mxu0
    %v432 = vadd.f32 0.0, %v431
    %v433 = vpop.f32.mrf.mxu0
    %434 = vdwg.mxu0
    %435 = vmatpush.bf16.msra.mxu0 %v375
    %436 = vmatpush.bf16.msra.mxu0 %v371
    %437 = vmatpush.bf16.msra.mxu0 %v367
    %438 = vmatpush.bf16.msra.mxu0 %v363
    %439 = vmatpush.bf16.msra.mxu0 %v359
    %440 = vmatpush.bf16.msra.mxu0 %v355
    %441 = vmatpush.bf16.msra.mxu0 %v351
    %442 = vmatpush.bf16.msra.mxu0 %v347
    %443 = vmatmul.bf16.gmra.mxu0 0
    %v444 = vpop.f32.mrf.mxu0
    %v445 = vadd.f32 0.0, %v444
    %v446 = vpop.f32.mrf.mxu0
    %447 = vdwg.mxu0
    %448 = vmatpush.bf16.msra.mxu0 %v376
    %449 = vmatpush.bf16.msra.mxu0 %v372
    %450 = vmatpush.bf16.msra.mxu0 %v368
    %451 = vmatpush.bf16.msra.mxu0 %v364
    %452 = vmatpush.bf16.msra.mxu0 %v360
    %453 = vmatpush.bf16.msra.mxu0 %v356
    %454 = vmatpush.bf16.msra.mxu0 %v352
    %455 = vmatpush.bf16.msra.mxu0 %v348
    %456 = vmatmul.bf16.gmra.mxu0 0
    %v457 = vpop.f32.mrf.mxu0
    %v458 = vadd.f32 0.0, %v457
    %v459 = vpop.f32.mrf.mxu0
    %460 = vdwg.mxu0
    %v461 = vadd.f32 %v213, %v419
    %v462 = vadd.f32 %v214, %v432
    %v463 = vadd.f32 %v215, %v445
    %v464 = vadd.f32 %v216, %v458
    %v465 = vmul.f32 %v461, 0.5
    %v466 = vmul.f32 %v462, 0.5
    %v467 = vmul.f32 %v463, 0.5
    %v468 = vtanh.pop %v465
    %v469 = vtanh.pop %v466
    %v470 = vtanh.pop %v467
    %v471 = vmul.f32 %v468, 0.5
    %v472 = vmul.f32 %v469, 0.5
    %v473 = vmul.f32 %v470, 0.5
    %v474 = vadd.f32 %v471, 0.5
    %v475 = vadd.f32 %v472, 0.5
    %v476 = vadd.f32 %v473, 0.5
    %v477 = vtanh.pop %v464
    %v478 = vmul.f32 %v475, 0.0
    %v479 = vmul.f32 %v474, %v477
    %v480 = vadd.f32 %v478, %v479
    %v481 = vtanh.pop %v480
    %v482 = vmul.f32 %v476, %v481
    %v483 = vld [vmem:[#allocation2] sm:$0xc]
    %v484 = vld [vmem:[#allocation2 + $0x8] sm:$0xc]
    %v485 = vld [vmem:[#allocation2 + $0x10] sm:$0xc]
    %v486 = vld [vmem:[#allocation2 + $0x18] sm:$0xc]
    %v487 = vpack.c.bf16 %v482, %v482
    %488 = vmatpush.bf16.msra.mxu0 %v373
    %489 = vmatpush.bf16.msra.mxu0 %v369
    %490 = vmatpush.bf16.msra.mxu0 %v365
    %491 = vmatpush.bf16.msra.mxu0 %v361
    %492 = vmatpush.bf16.msra.mxu0 %v357
    %493 = vmatpush.bf16.msra.mxu0 %v353
    %494 = vmatpush.bf16.msra.mxu0 %v349
    %495 = vmatpush.bf16.msra.mxu0 %v345
    %496 = vmatmul.bf16.gmra.mxu0 %v487
    %v497 = vpop.f32.mrf.mxu0
    %v498 = vadd.f32 0.0, %v497
    %v499 = vpop.f32.mrf.mxu0
    %500 = vdwg.mxu0
    %501 = vmatpush.bf16.msra.mxu0 %v374
    %502 = vmatpush.bf16.msra.mxu0 %v370
    %503 = vmatpush.bf16.msra.mxu0 %v366
    %504 = vmatpush.bf16.msra.mxu0 %v362
    %505 = vmatpush.bf16.msra.mxu0 %v358
    %506 = vmatpush.bf16.msra.mxu0 %v354
    %507 = vmatpush.bf16.msra.mxu0 %v350
    %508 = vmatpush.bf16.msra.mxu0 %v346
    %509 = vmatmul.bf16.gmra.mxu0 %v487
    %v510 = vpop.f32.mrf.mxu0
    %v511 = vadd.f32 0.0, %v510
    %v512 = vpop.f32.mrf.mxu0
    %513 = vdwg.mxu0
    %514 = vmatpush.bf16.msra.mxu0 %v375
    %515 = vmatpush.bf16.msra.mxu0 %v371
    %516 = vmatpush.bf16.msra.mxu0 %v367
    %517 = vmatpush.bf16.msra.mxu0 %v363
    %518 = vmatpush.bf16.msra.mxu0 %v359
    %519 = vmatpush.bf16.msra.mxu0 %v355
    %520 = vmatpush.bf16.msra.mxu0 %v351
    %521 = vmatpush.bf16.msra.mxu0 %v347
    %522 = vmatmul.bf16.gmra.mxu0 %v487
    %v523 = vpop.f32.mrf.mxu0
    %v524 = vadd.f32 0.0, %v523
    %v525 = vpop.f32.mrf.mxu0
    %526 = vdwg.mxu0
    %527 = vmatpush.bf16.msra.mxu0 %v376
    %528 = vmatpush.bf16.msra.mxu0 %v372
    %529 = vmatpush.bf16.msra.mxu0 %v368
    %530 = vmatpush.bf16.msra.mxu0 %v364
    %531 = vmatpush.bf16.msra.mxu0 %v360
    %532 = vmatpush.bf16.msra.mxu0 %v356
    %533 = vmatpush.bf16.msra.mxu0 %v352
    %534 = vmatpush.bf16.msra.mxu0 %v348
    %535 = vmatmul.bf16.gmra.mxu0 %v487
    %v536 = vpop.f32.mrf.mxu0
    %v537 = vadd.f32 0.0, %v536
    %v538 = vpop.f32.mrf.mxu0
    %539 = vdwg.mxu0
    %v544 = vrot.slane %v498, 6
    %v545 = vrot.slane %v511, 6
    %v546 = vrot.slane %v524, 6
    %v547 = vrot.slane %v537, 6
    %v552 = vadd.f32 %v483, %v544
    %v553 = vadd.f32 %v484, %v545
    %v554 = vadd.f32 %v485, %v546
    %v555 = vadd.f32 %v486, %v547
    %v556 = vmul.f32 %v552, 0.5
    %v557 = vmul.f32 %v553, 0.5
    %v558 = vmul.f32 %v554, 0.5
    %v559 = vtanh.pop %v556
    %v560 = vtanh.pop %v557
    %v561 = vtanh.pop %v558
    %v562 = vmul.f32 %v559, 0.5
    %v563 = vmul.f32 %v560, 0.5
    %v564 = vmul.f32 %v561, 0.5
    %v565 = vadd.f32 %v562, 0.5
    %v566 = vadd.f32 %v563, 0.5
    %v567 = vadd.f32 %v564, 0.5
    %v568 = vtanh.pop %v555
    %v570 = vrot.slane %v480, 6
    %v572 = vmul.f32 %v566, %v570
    %v573 = vmul.f32 %v565, %v568
    %v574 = vadd.f32 %v572, %v573
    %v575 = vtanh.pop %v574
    %v576 = vmul.f32 %v567, %v575
    %v577 = vld [vmem:[#allocation2] sm:$0x30]
    %v578 = vld [vmem:[#allocation2 + $0x8] sm:$0x30]
    %v579 = vld [vmem:[#allocation2 + $0x10] sm:$0x30]
    %v580 = vld [vmem:[#allocation2 + $0x18] sm:$0x30]
    %v581 = vpack.c.bf16 %v576, %v576
    %v583 = vrot.slane %v581, 1
    %585 = vmatpush.bf16.msra.mxu0 %v373
    %586 = vmatpush.bf16.msra.mxu0 %v369
    %587 = vmatpush.bf16.msra.mxu0 %v365
    %588 = vmatpush.bf16.msra.mxu0 %v361
    %589 = vmatpush.bf16.msra.mxu0 %v357
    %590 = vmatpush.bf16.msra.mxu0 %v353
    %591 = vmatpush.bf16.msra.mxu0 %v349
    %592 = vmatpush.bf16.msra.mxu0 %v345
    %593 = vmatmul.bf16.gmra.mxu0 %v583
    %v594 = vpop.f32.mrf.mxu0
    %v595 = vadd.f32 0.0, %v594
    %v596 = vpop.f32.mrf.mxu0
    %597 = vdwg.mxu0
    %598 = vmatpush.bf16.msra.mxu0 %v374
    %599 = vmatpush.bf16.msra.mxu0 %v370
    %600 = vmatpush.bf16.msra.mxu0 %v366
    %601 = vmatpush.bf16.msra.mxu0 %v362
    %602 = vmatpush.bf16.msra.mxu0 %v358
    %603 = vmatpush.bf16.msra.mxu0 %v354
    %604 = vmatpush.bf16.msra.mxu0 %v350
    %605 = vmatpush.bf16.msra.mxu0 %v346
    %606 = vmatmul.bf16.gmra.mxu0 %v583
    %v607 = vpop.f32.mrf.mxu0
    %v608 = vadd.f32 0.0, %v607
    %v609 = vpop.f32.mrf.mxu0
    %610 = vdwg.mxu0
    %611 = vmatpush.bf16.msra.mxu0 %v375
    %612 = vmatpush.bf16.msra.mxu0 %v371
    %613 = vmatpush.bf16.msra.mxu0 %v367
    %614 = vmatpush.bf16.msra.mxu0 %v363
    %615 = vmatpush.bf16.msra.mxu0 %v359
    %616 = vmatpush.bf16.msra.mxu0 %v355
    %617 = vmatpush.bf16.msra.mxu0 %v351
    %618 = vmatpush.bf16.msra.mxu0 %v347
    %619 = vmatmul.bf16.gmra.mxu0 %v583
    %v620 = vpop.f32.mrf.mxu0
    %v621 = vadd.f32 0.0, %v620
    %v622 = vpop.f32.mrf.mxu0
    %623 = vdwg.mxu0
    %624 = vmatpush.bf16.msra.mxu0 %v376
    %625 = vmatpush.bf16.msra.mxu0 %v372
    %626 = vmatpush.bf16.msra.mxu0 %v368
    %627 = vmatpush.bf16.msra.mxu0 %v364
    %628 = vmatpush.bf16.msra.mxu0 %v360
    %629 = vmatpush.bf16.msra.mxu0 %v356
    %630 = vmatpush.bf16.msra.mxu0 %v352
    %631 = vmatpush.bf16.msra.mxu0 %v348
    %632 = vmatmul.bf16.gmra.mxu0 %v583
    %v633 = vpop.f32.mrf.mxu0
    %v634 = vadd.f32 0.0, %v633
    %v635 = vpop.f32.mrf.mxu0
    %636 = vdwg.mxu0
    %v641 = vrot.slane %v595, 4
    %v642 = vrot.slane %v608, 4
    %v643 = vrot.slane %v621, 4
    %v644 = vrot.slane %v634, 4
    %v649 = vadd.f32 %v577, %v641
    %v650 = vadd.f32 %v578, %v642
    %v651 = vadd.f32 %v579, %v643
    %v652 = vadd.f32 %v580, %v644
    %v653 = vmul.f32 %v649, 0.5
    %v654 = vmul.f32 %v650, 0.5
    %v655 = vmul.f32 %v651, 0.5
    %v656 = vtanh.pop %v653
    %v657 = vtanh.pop %v654
    %v658 = vtanh.pop %v655
    %v659 = vmul.f32 %v656, 0.5
    %v660 = vmul.f32 %v657, 0.5
    %v661 = vmul.f32 %v658, 0.5
    %v662 = vadd.f32 %v659, 0.5
    %v663 = vadd.f32 %v660, 0.5
    %v664 = vadd.f32 %v661, 0.5
    %v665 = vtanh.pop %v652
    %v667 = vrot.slane %v574, 6
    %v669 = vmul.f32 %v663, %v667
    %v670 = vmul.f32 %v662, %v665
    %v671 = vadd.f32 %v669, %v670
    %v672 = vtanh.pop %v671
    %v673 = vmul.f32 %v664, %v672
    %v674 = vld [vmem:[#allocation2] sm:$0xc0]
    %v675 = vld [vmem:[#allocation2 + $0x8] sm:$0xc0]
    %v676 = vld [vmem:[#allocation2 + $0x10] sm:$0xc0]
    %v677 = vld [vmem:[#allocation2 + $0x18] sm:$0xc0]
    %v678 = vpack.c.bf16 %v673, %v673
    %v680 = vrot.slane %v678, 2
    %682 = vmatpush.bf16.msra.mxu0 %v373
    %683 = vmatpush.bf16.msra.mxu0 %v369
    %684 = vmatpush.bf16.msra.mxu0 %v365
    %685 = vmatpush.bf16.msra.mxu0 %v361
    %686 = vmatpush.bf16.msra.mxu0 %v357
    %687 = vmatpush.bf16.msra.mxu0 %v353
    %688 = vmatpush.bf16.msra.mxu0 %v349
    %689 = vmatpush.bf16.msra.mxu0 %v345
    %690 = vmatmul.bf16.gmra.mxu0 %v680
    %v691 = vpop.f32.mrf.mxu0
    %v692 = vadd.f32 0.0, %v691
    %v693 = vpop.f32.mrf.mxu0
    %694 = vdwg.mxu0
    %695 = vmatpush.bf16.msra.mxu0 %v374
    %696 = vmatpush.bf16.msra.mxu0 %v370
    %697 = vmatpush.bf16.msra.mxu0 %v366
    %698 = vmatpush.bf16.msra.mxu0 %v362
    %699 = vmatpush.bf16.msra.mxu0 %v358
    %700 = vmatpush.bf16.msra.mxu0 %v354
    %701 = vmatpush.bf16.msra.mxu0 %v350
    %702 = vmatpush.bf16.msra.mxu0 %v346
    %703 = vmatmul.bf16.gmra.mxu0 %v680
    %v704 = vpop.f32.mrf.mxu0
    %v705 = vadd.f32 0.0, %v704
    %v706 = vpop.f32.mrf.mxu0
    %707 = vdwg.mxu0
    %708 = vmatpush.bf16.msra.mxu0 %v375
    %709 = vmatpush.bf16.msra.mxu0 %v371
    %710 = vmatpush.bf16.msra.mxu0 %v367
    %711 = vmatpush.bf16.msra.mxu0 %v363
    %712 = vmatpush.bf16.msra.mxu0 %v359
    %713 = vmatpush.bf16.msra.mxu0 %v355
    %714 = vmatpush.bf16.msra.mxu0 %v351
    %715 = vmatpush.bf16.msra.mxu0 %v347
    %716 = vmatmul.bf16.gmra.mxu0 %v680
    %v717 = vpop.f32.mrf.mxu0
    %v718 = vadd.f32 0.0, %v717
    %v719 = vpop.f32.mrf.mxu0
    %720 = vdwg.mxu0
    %721 = vmatpush.bf16.msra.mxu0 %v376
    %722 = vmatpush.bf16.msra.mxu0 %v372
    %723 = vmatpush.bf16.msra.mxu0 %v368
    %724 = vmatpush.bf16.msra.mxu0 %v364
    %725 = vmatpush.bf16.msra.mxu0 %v360
    %726 = vmatpush.bf16.msra.mxu0 %v356
    %727 = vmatpush.bf16.msra.mxu0 %v352
    %728 = vmatpush.bf16.msra.mxu0 %v348
    %729 = vmatmul.bf16.gmra.mxu0 %v680
    %v730 = vpop.f32.mrf.mxu0
    %v731 = vadd.f32 0.0, %v730
    %v732 = vpop.f32.mrf.mxu0
    %733 = vdwg.mxu0
    %v738 = vrot.slane %v692, 2
    %v739 = vrot.slane %v705, 2
    %v740 = vrot.slane %v718, 2
    %v741 = vrot.slane %v731, 2
    %v746 = vadd.f32 %v674, %v738
    %v747 = vadd.f32 %v675, %v739
    %v748 = vadd.f32 %v676, %v740
    %v749 = vadd.f32 %v677, %v741
    %v750 = vmul.f32 %v746, 0.5
    %v751 = vmul.f32 %v747, 0.5
    %v752 = vmul.f32 %v748, 0.5
    %v753 = vtanh.pop %v750
    %v754 = vtanh.pop %v751
    %v755 = vtanh.pop %v752
    %v756 = vmul.f32 %v753, 0.5
    %v757 = vmul.f32 %v754, 0.5
    %v758 = vmul.f32 %v755, 0.5
    %v759 = vadd.f32 %v756, 0.5
    %v760 = vadd.f32 %v757, 0.5
    %v761 = vadd.f32 %v758, 0.5
    %v762 = vtanh.pop %v749
    %v764 = vrot.slane %v671, 6
    %v766 = vmul.f32 %v760, %v764
    %v767 = vmul.f32 %v759, %v762
    %v768 = vadd.f32 %v766, %v767
    %v769 = vtanh.pop %v768
    %v770 = vmul.f32 %v761, %v769
    %v771 = vld [vmem:[#allocation2 + $0x20] sm:$0x3]
    %v772 = vld [vmem:[#allocation2 + $0x28] sm:$0x3]
    %v773 = vld [vmem:[#allocation2 + $0x30] sm:$0x3]
    %v774 = vld [vmem:[#allocation2 + $0x38] sm:$0x3]
    %v775 = vpack.c.bf16 %v770, %v770
    %v777 = vrot.slane %v775, 3
    %779 = vmatpush.bf16.msra.mxu0 %v373
    %780 = vmatpush.bf16.msra.mxu0 %v369
    %781 = vmatpush.bf16.msra.mxu0 %v365
    %782 = vmatpush.bf16.msra.mxu0 %v361
    %783 = vmatpush.bf16.msra.mxu0 %v357
    %784 = vmatpush.bf16.msra.mxu0 %v353
    %785 = vmatpush.bf16.msra.mxu0 %v349
    %786 = vmatpush.bf16.msra.mxu0 %v345
    %787 = vmatmul.bf16.gmra.mxu0 %v777
    %v788 = vpop.f32.mrf.mxu0
    %v789 = vadd.f32 0.0, %v788
    %v790 = vpop.f32.mrf.mxu0
    %791 = vdwg.mxu0
    %792 = vmatpush.bf16.msra.mxu0 %v374
    %793 = vmatpush.bf16.msra.mxu0 %v370
    %794 = vmatpush.bf16.msra.mxu0 %v366
    %795 = vmatpush.bf16.msra.mxu0 %v362
    %796 = vmatpush.bf16.msra.mxu0 %v358
    %797 = vmatpush.bf16.msra.mxu0 %v354
    %798 = vmatpush.bf16.msra.mxu0 %v350
    %799 = vmatpush.bf16.msra.mxu0 %v346
    %800 = vmatmul.bf16.gmra.mxu0 %v777
    %v801 = vpop.f32.mrf.mxu0
    %v802 = vadd.f32 0.0, %v801
    %v803 = vpop.f32.mrf.mxu0
    %804 = vdwg.mxu0
    %805 = vmatpush.bf16.msra.mxu0 %v375
    %806 = vmatpush.bf16.msra.mxu0 %v371
    %807 = vmatpush.bf16.msra.mxu0 %v367
    %808 = vmatpush.bf16.msra.mxu0 %v363
    %809 = vmatpush.bf16.msra.mxu0 %v359
    %810 = vmatpush.bf16.msra.mxu0 %v355
    %811 = vmatpush.bf16.msra.mxu0 %v351
    %812 = vmatpush.bf16.msra.mxu0 %v347
    %813 = vmatmul.bf16.gmra.mxu0 %v777
    %v814 = vpop.f32.mrf.mxu0
    %v815 = vadd.f32 0.0, %v814
    %v816 = vpop.f32.mrf.mxu0
    %817 = vdwg.mxu0
    %818 = vmatpush.bf16.msra.mxu0 %v376
    %819 = vmatpush.bf16.msra.mxu0 %v372
    %820 = vmatpush.bf16.msra.mxu0 %v368
    %821 = vmatpush.bf16.msra.mxu0 %v364
    %822 = vmatpush.bf16.msra.mxu0 %v360
    %823 = vmatpush.bf16.msra.mxu0 %v356
    %824 = vmatpush.bf16.msra.mxu0 %v352
    %825 = vmatpush.bf16.msra.mxu0 %v348
    %826 = vmatmul.bf16.gmra.mxu0 %v777
    %v827 = vpop.f32.mrf.mxu0
    %v828 = vadd.f32 0.0, %v827
    %v829 = vpop.f32.mrf.mxu0
    %830 = vdwg.mxu0
    %v831 = vadd.f32 %v771, %v789
    %v832 = vadd.f32 %v772, %v802
    %v833 = vadd.f32 %v773, %v815
    %v834 = vadd.f32 %v774, %v828
    %v835 = vmul.f32 %v831, 0.5
    %v836 = vmul.f32 %v832, 0.5
    %v837 = vmul.f32 %v833, 0.5
    %v838 = vtanh.pop %v835
    %v839 = vtanh.pop %v836
    %v840 = vtanh.pop %v837
    %v841 = vmul.f32 %v838, 0.5
    %v842 = vmul.f32 %v839, 0.5
    %v843 = vmul.f32 %v840, 0.5
    %v844 = vadd.f32 %v841, 0.5
    %v845 = vadd.f32 %v842, 0.5
    %v846 = vadd.f32 %v843, 0.5
    %v847 = vtanh.pop %v834
    %v849 = vrot.slane %v768, 6
    %v851 = vmul.f32 %v845, %v849
    %v852 = vmul.f32 %v844, %v847
    %v853 = vadd.f32 %v851, %v852
    %v854 = vtanh.pop %v853
    %v855 = vmul.f32 %v846, %v854
    %v856 = vld [vmem:[#allocation2 + $0x20] sm:$0xc]
    %v857 = vld [vmem:[#allocation2 + $0x28] sm:$0xc]
    %v858 = vld [vmem:[#allocation2 + $0x30] sm:$0xc]
    %v859 = vld [vmem:[#allocation2 + $0x38] sm:$0xc]
    %v860 = vpack.c.bf16 %v855, %v855
    %861 = vmatpush.bf16.msra.mxu0 %v373
    %862 = vmatpush.bf16.msra.mxu0 %v369
    %863 = vmatpush.bf16.msra.mxu0 %v365
    %864 = vmatpush.bf16.msra.mxu0 %v361
    %865 = vmatpush.bf16.msra.mxu0 %v357
    %866 = vmatpush.bf16.msra.mxu0 %v353
    %867 = vmatpush.bf16.msra.mxu0 %v349
    %868 = vmatpush.bf16.msra.mxu0 %v345
    %869 = vmatmul.bf16.gmra.mxu0 %v860
    %v870 = vpop.f32.mrf.mxu0
    %v871 = vadd.f32 0.0, %v870
    %v872 = vpop.f32.mrf.mxu0
    %873 = vdwg.mxu0
    %874 = vmatpush.bf16.msra.mxu0 %v374
    %875 = vmatpush.bf16.msra.mxu0 %v370
    %876 = vmatpush.bf16.msra.mxu0 %v366
    %877 = vmatpush.bf16.msra.mxu0 %v362
    %878 = vmatpush.bf16.msra.mxu0 %v358
    %879 = vmatpush.bf16.msra.mxu0 %v354
    %880 = vmatpush.bf16.msra.mxu0 %v350
    %881 = vmatpush.bf16.msra.mxu0 %v346
    %882 = vmatmul.bf16.gmra.mxu0 %v860
    %v883 = vpop.f32.mrf.mxu0
    %v884 = vadd.f32 0.0, %v883
    %v885 = vpop.f32.mrf.mxu0
    %886 = vdwg.mxu0
    %887 = vmatpush.bf16.msra.mxu0 %v375
    %888 = vmatpush.bf16.msra.mxu0 %v371
    %889 = vmatpush.bf16.msra.mxu0 %v367
    %890 = vmatpush.bf16.msra.mxu0 %v363
    %891 = vmatpush.bf16.msra.mxu0 %v359
    %892 = vmatpush.bf16.msra.mxu0 %v355
    %893 = vmatpush.bf16.msra.mxu0 %v351
    %894 = vmatpush.bf16.msra.mxu0 %v347
    %895 = vmatmul.bf16.gmra.mxu0 %v860
    %v896 = vpop.f32.mrf.mxu0
    %v897 = vadd.f32 0.0, %v896
    %v898 = vpop.f32.mrf.mxu0
    %899 = vdwg.mxu0
    %900 = vmatpush.bf16.msra.mxu0 %v376
    %901 = vmatpush.bf16.msra.mxu0 %v372
    %902 = vmatpush.bf16.msra.mxu0 %v368
    %903 = vmatpush.bf16.msra.mxu0 %v364
    %904 = vmatpush.bf16.msra.mxu0 %v360
    %905 = vmatpush.bf16.msra.mxu0 %v356
    %906 = vmatpush.bf16.msra.mxu0 %v352
    %907 = vmatpush.bf16.msra.mxu0 %v348
    %908 = vmatmul.bf16.gmra.mxu0 %v860
    %v909 = vpop.f32.mrf.mxu0
    %v910 = vadd.f32 0.0, %v909
    %v911 = vpop.f32.mrf.mxu0
    %912 = vdwg.mxu0
    %v917 = vrot.slane %v871, 6
    %v918 = vrot.slane %v884, 6
    %v919 = vrot.slane %v897, 6
    %v920 = vrot.slane %v910, 6
    %v925 = vadd.f32 %v856, %v917
    %v926 = vadd.f32 %v857, %v918
    %v927 = vadd.f32 %v858, %v919
    %v928 = vadd.f32 %v859, %v920
    %v929 = vmul.f32 %v925, 0.5
    %v930 = vmul.f32 %v926, 0.5
    %v931 = vmul.f32 %v927, 0.5
    %v932 = vtanh.pop %v929
    %v933 = vtanh.pop %v930
    %v934 = vtanh.pop %v931
    %v935 = vmul.f32 %v932, 0.5
    %v936 = vmul.f32 %v933, 0.5
    %v937 = vmul.f32 %v934, 0.5
    %v938 = vadd.f32 %v935, 0.5
    %v939 = vadd.f32 %v936, 0.5
    %v940 = vadd.f32 %v937, 0.5
    %v941 = vtanh.pop %v928
    %v943 = vrot.slane %v853, 6
    %v945 = vmul.f32 %v939, %v943
    %v946 = vmul.f32 %v938, %v941
    %v947 = vadd.f32 %v945, %v946
    %v948 = vtanh.pop %v947
    %v949 = vmul.f32 %v940, %v948
    %v950 = vld [vmem:[#allocation2 + $0x20] sm:$0x30]
    %v951 = vld [vmem:[#allocation2 + $0x28] sm:$0x30]
    %v952 = vld [vmem:[#allocation2 + $0x30] sm:$0x30]
    %v953 = vld [vmem:[#allocation2 + $0x38] sm:$0x30]
    %v954 = vpack.c.bf16 %v949, %v949
    %v956 = vrot.slane %v954, 1
    %958 = vmatpush.bf16.msra.mxu0 %v373
    %959 = vmatpush.bf16.msra.mxu0 %v369
    %960 = vmatpush.bf16.msra.mxu0 %v365
    %961 = vmatpush.bf16.msra.mxu0 %v361
    %962 = vmatpush.bf16.msra.mxu0 %v357
    %963 = vmatpush.bf16.msra.mxu0 %v353
    %964 = vmatpush.bf16.msra.mxu0 %v349
    %965 = vmatpush.bf16.msra.mxu0 %v345
    %966 = vmatmul.bf16.gmra.mxu0 %v956
    %v967 = vpop.f32.mrf.mxu0
    %v968 = vadd.f32 0.0, %v967
    %v969 = vpop.f32.mrf.mxu0
    %970 = vdwg.mxu0
    %971 = vmatpush.bf16.msra.mxu0 %v374
    %972 = vmatpush.bf16.msra.mxu0 %v370
    %973 = vmatpush.bf16.msra.mxu0 %v366
    %974 = vmatpush.bf16.msra.mxu0 %v362
    %975 = vmatpush.bf16.msra.mxu0 %v358
    %976 = vmatpush.bf16.msra.mxu0 %v354
    %977 = vmatpush.bf16.msra.mxu0 %v350
    %978 = vmatpush.bf16.msra.mxu0 %v346
    %979 = vmatmul.bf16.gmra.mxu0 %v956
    %v980 = vpop.f32.mrf.mxu0
    %v981 = vadd.f32 0.0, %v980
    %v982 = vpop.f32.mrf.mxu0
    %983 = vdwg.mxu0
    %984 = vmatpush.bf16.msra.mxu0 %v375
    %985 = vmatpush.bf16.msra.mxu0 %v371
    %986 = vmatpush.bf16.msra.mxu0 %v367
    %987 = vmatpush.bf16.msra.mxu0 %v363
    %988 = vmatpush.bf16.msra.mxu0 %v359
    %989 = vmatpush.bf16.msra.mxu0 %v355
    %990 = vmatpush.bf16.msra.mxu0 %v351
    %991 = vmatpush.bf16.msra.mxu0 %v347
    %992 = vmatmul.bf16.gmra.mxu0 %v956
    %v993 = vpop.f32.mrf.mxu0
    %v994 = vadd.f32 0.0, %v993
    %v995 = vpop.f32.mrf.mxu0
    %996 = vdwg.mxu0
    %997 = vmatpush.bf16.msra.mxu0 %v376
    %998 = vmatpush.bf16.msra.mxu0 %v372
    %999 = vmatpush.bf16.msra.mxu0 %v368
    %1000 = vmatpush.bf16.msra.mxu0 %v364
    %1001 = vmatpush.bf16.msra.mxu0 %v360
    %1002 = vmatpush.bf16.msra.mxu0 %v356
    %1003 = vmatpush.bf16.msra.mxu0 %v352
    %1004 = vmatpush.bf16.msra.mxu0 %v348
    %1005 = vmatmul.bf16.gmra.mxu0 %v956
    %v1006 = vpop.f32.mrf.mxu0
    %v1007 = vadd.f32 0.0, %v1006
    %v1008 = vpop.f32.mrf.mxu0
    %1009 = vdwg.mxu0
    %v1014 = vrot.slane %v968, 4
    %v1015 = vrot.slane %v981, 4
    %v1016 = vrot.slane %v994, 4
    %v1017 = vrot.slane %v1007, 4
    %v1022 = vadd.f32 %v950, %v1014
    %v1023 = vadd.f32 %v951, %v1015
    %v1024 = vadd.f32 %v952, %v1016
    %v1025 = vadd.f32 %v953, %v1017
    %v1026 = vmul.f32 %v1022, 0.5
    %v1027 = vmul.f32 %v1023, 0.5
    %v1028 = vmul.f32 %v1024, 0.5
    %v1029 = vtanh.pop %v1026
    %v1030 = vtanh.pop %v1027
    %v1031 = vtanh.pop %v1028
    %v1032 = vmul.f32 %v1029, 0.5
    %v1033 = vmul.f32 %v1030, 0.5
    %v1034 = vmul.f32 %v1031, 0.5
    %v1035 = vadd.f32 %v1032, 0.5
    %v1036 = vadd.f32 %v1033, 0.5
    %v1037 = vadd.f32 %v1034, 0.5
    %v1038 = vtanh.pop %v1025
    %v1040 = vrot.slane %v947, 6
    %v1042 = vmul.f32 %v1036, %v1040
    %v1043 = vmul.f32 %v1035, %v1038
    %v1044 = vadd.f32 %v1042, %v1043
    %v1045 = vtanh.pop %v1044
    %v1046 = vmul.f32 %v1037, %v1045
    %v1047 = vld [vmem:[#allocation2 + $0x20] sm:$0xc0]
    %v1048 = vld [vmem:[#allocation2 + $0x28] sm:$0xc0]
    %v1049 = vld [vmem:[#allocation2 + $0x30] sm:$0xc0]
    %v1050 = vld [vmem:[#allocation2 + $0x38] sm:$0xc0]
    %v1051 = vpack.c.bf16 %v1046, %v1046
    %v1053 = vrot.slane %v1051, 2
    %1055 = vmatpush.bf16.msra.mxu0 %v373
    %1056 = vmatpush.bf16.msra.mxu0 %v369
    %1057 = vmatpush.bf16.msra.mxu0 %v365
    %1058 = vmatpush.bf16.msra.mxu0 %v361
    %1059 = vmatpush.bf16.msra.mxu0 %v357
    %1060 = vmatpush.bf16.msra.mxu0 %v353
    %1061 = vmatpush.bf16.msra.mxu0 %v349
    %1062 = vmatpush.bf16.msra.mxu0 %v345
    %1063 = vmatmul.bf16.gmra.mxu0 %v1053
    %v1064 = vpop.f32.mrf.mxu0
    %v1065 = vadd.f32 0.0, %v1064
    %v1066 = vpop.f32.mrf.mxu0
    %1067 = vdwg.mxu0
    %1068 = vmatpush.bf16.msra.mxu0 %v374
    %1069 = vmatpush.bf16.msra.mxu0 %v370
    %1070 = vmatpush.bf16.msra.mxu0 %v366
    %1071 = vmatpush.bf16.msra.mxu0 %v362
    %1072 = vmatpush.bf16.msra.mxu0 %v358
    %1073 = vmatpush.bf16.msra.mxu0 %v354
    %1074 = vmatpush.bf16.msra.mxu0 %v350
    %1075 = vmatpush.bf16.msra.mxu0 %v346
    %1076 = vmatmul.bf16.gmra.mxu0 %v1053
    %v1077 = vpop.f32.mrf.mxu0
    %v1078 = vadd.f32 0.0, %v1077
    %v1079 = vpop.f32.mrf.mxu0
    %1080 = vdwg.mxu0
    %1081 = vmatpush.bf16.msra.mxu0 %v375
    %1082 = vmatpush.bf16.msra.mxu0 %v371
    %1083 = vmatpush.bf16.msra.mxu0 %v367
    %1084 = vmatpush.bf16.msra.mxu0 %v363
    %1085 = vmatpush.bf16.msra.mxu0 %v359
    %1086 = vmatpush.bf16.msra.mxu0 %v355
    %1087 = vmatpush.bf16.msra.mxu0 %v351
    %1088 = vmatpush.bf16.msra.mxu0 %v347
    %1089 = vmatmul.bf16.gmra.mxu0 %v1053
    %v1090 = vpop.f32.mrf.mxu0
    %v1091 = vadd.f32 0.0, %v1090
    %v1092 = vpop.f32.mrf.mxu0
    %1093 = vdwg.mxu0
    %1094 = vmatpush.bf16.msra.mxu0 %v376
    %1095 = vmatpush.bf16.msra.mxu0 %v372
    %1096 = vmatpush.bf16.msra.mxu0 %v368
    %1097 = vmatpush.bf16.msra.mxu0 %v364
    %1098 = vmatpush.bf16.msra.mxu0 %v360
    %1099 = vmatpush.bf16.msra.mxu0 %v356
    %1100 = vmatpush.bf16.msra.mxu0 %v352
    %1101 = vmatpush.bf16.msra.mxu0 %v348
    %1102 = vmatmul.bf16.gmra.mxu0 %v1053
    %v1103 = vpop.f32.mrf.mxu0
    %v1104 = vadd.f32 0.0, %v1103
    %v1105 = vpop.f32.mrf.mxu0
    %1106 = vdwg.mxu0
    %v1111 = vrot.slane %v1065, 2
    %v1112 = vrot.slane %v1078, 2
    %v1113 = vrot.slane %v1091, 2
    %v1114 = vrot.slane %v1104, 2
    %v1119 = vadd.f32 %v1047, %v1111
    %v1120 = vadd.f32 %v1048, %v1112
    %v1121 = vadd.f32 %v1049, %v1113
    %v1122 = vadd.f32 %v1050, %v1114
    %v1123 = vmul.f32 %v1119, 0.5
    %v1124 = vmul.f32 %v1120, 0.5
    %v1125 = vmul.f32 %v1121, 0.5
    %v1126 = vtanh.pop %v1123
    %v1127 = vtanh.pop %v1124
    %v1128 = vtanh.pop %v1125
    %v1129 = vmul.f32 %v1126, 0.5
    %v1130 = vmul.f32 %v1127, 0.5
    %v1131 = vmul.f32 %v1128, 0.5
    %v1132 = vadd.f32 %v1129, 0.5
    %v1133 = vadd.f32 %v1130, 0.5
    %v1134 = vadd.f32 %v1131, 0.5
    %v1135 = vtanh.pop %v1122
    %v1137 = vrot.slane %v1044, 6
    %v1139 = vmul.f32 %v1133, %v1137
    %v1140 = vmul.f32 %v1132, %v1135
    %v1141 = vadd.f32 %v1139, %v1140
    %v1142 = vtanh.pop %v1141
    %v1143 = vmul.f32 %v1134, %v1142
    %v1144 = vpack.c.bf16 %v1143, %v1143
    %v1145 = vld [vmem:[#allocation11] sm:$0xf]
    %v1146 = vld [vmem:[#allocation11 + $0x4] sm:$0xf]
    %v1147 = vld [vmem:[#allocation11 + $0x8] sm:$0xf]
    %v1148 = vld [vmem:[#allocation11 + $0xc] sm:$0xf]
    %v1149 = vld [vmem:[#allocation11 + $0x10] sm:$0xf]
    %v1150 = vld [vmem:[#allocation11 + $0x14] sm:$0xf]
    %v1151 = vld [vmem:[#allocation11 + $0x18] sm:$0xf]
    %v1152 = vld [vmem:[#allocation11 + $0x1c] sm:$0xf]
    %v1153 = vld [vmem:[#allocation11 + $0x20] sm:$0xf]
    %v1154 = vld [vmem:[#allocation11 + $0x24] sm:$0xf]
    %v1155 = vld [vmem:[#allocation11 + $0x28] sm:$0xf]
    %v1156 = vld [vmem:[#allocation11 + $0x2c] sm:$0xf]
    %v1157 = vld [vmem:[#allocation11 + $0x30] sm:$0xf]
    %v1158 = vld [vmem:[#allocation11 + $0x34] sm:$0xf]
    %v1159 = vld [vmem:[#allocation11 + $0x38] sm:$0xf]
    %v1160 = vld [vmem:[#allocation11 + $0x3c] sm:$0xf]
    %v1161 = vld [vmem:[%s5] sm:$0x1]
    %v1163 = vperm.slane %v1161, 0
    %v1166 = vrot.slane %v1144, 3
    %v1184 = vunpack.c.l.b16 %v1145
    %v1185 = vunpack.c.l.b16 %v1146
    %v1186 = vunpack.c.l.b16 %v1147
    %v1187 = vunpack.c.l.b16 %v1148
    %v1188 = vunpack.c.l.b16 %v1149
    %v1189 = vunpack.c.l.b16 %v1150
    %v1190 = vunpack.c.l.b16 %v1151
    %v1191 = vunpack.c.l.b16 %v1152
    %v1192 = vunpack.c.l.b16 %v1153
    %v1193 = vunpack.c.l.b16 %v1154
    %v1194 = vunpack.c.l.b16 %v1155
    %v1195 = vunpack.c.l.b16 %v1156
    %v1196 = vunpack.c.l.b16 %v1157
    %v1197 = vunpack.c.l.b16 %v1158
    %v1198 = vunpack.c.l.b16 %v1159
    %v1199 = vunpack.c.l.b16 %v1160
    %v1200 = vpack.c.b16 %v1185, %v1184
    %v1201 = vpack.c.b16 %v1187, %v1186
    %v1202 = vpack.c.b16 %v1189, %v1188
    %v1203 = vpack.c.b16 %v1191, %v1190
    %v1204 = vpack.c.b16 %v1193, %v1192
    %v1205 = vpack.c.b16 %v1195, %v1194
    %v1206 = vpack.c.b16 %v1197, %v1196
    %v1207 = vpack.c.b16 %v1199, %v1198
    %1216 = vmatpush.bf16.msra.mxu0 %v1207
    %1217 = vmatpush.bf16.msra.mxu0 %v1206
    %1218 = vmatpush.bf16.msra.mxu0 %v1205
    %1219 = vmatpush.bf16.msra.mxu0 %v1204
    %1220 = vmatpush.bf16.msra.mxu0 %v1203
    %1221 = vmatpush.bf16.msra.mxu0 %v1202
    %1222 = vmatpush.bf16.msra.mxu0 %v1201
    %1223 = vmatpush.bf16.msra.mxu0 %v1200
    %1224 = vmatmul.bf16.gmra.mxu0 %v1166
    %v1225 = vpop.f32.mrf.mxu0
    %v1226 = vadd.f32 %v1163, %v1225
    %v1227 = vpop.f32.mrf.mxu0
    %1228 = vdwg.mxu0
    %1229 = vst [vmem:[#allocation12] sm:$0x3] %v1226
    %1231 = vst.sshfl [vmem:[#allocation1] sm:$0xff pattern:$0x73625140] %v1143
    %s1232 = scalar_lea.vmem [#allocation1], 3
    %v1233 = vld [vmem:[%s1232] ss:$4 sm:$0xff]
    %1235 = vst [vmem:[#allocation13] sm:$0x3] %v1233
    %1237 = vst.sshfl [vmem:[#allocation1] sm:$0xff pattern:$0x73625140] %v1141
    %s1238 = scalar_lea.vmem [#allocation1], 3
    %v1239 = vld [vmem:[%s1238] ss:$4 sm:$0xff]
    %1241 = vst [vmem:[#allocation13 + $0x2] sm:$0x3] %v1239
    // Predicated region
    $region46: #{tpu_custom_call.1} parent=1 // pred_check
      _
    $region47: #{tpu_custom_call.1} parent=1 // pred_check_branch
      %1243 = sbr.rel (0) target = $region49
    $region48: #{tpu_custom_call.1} parent=1 // pred_region
      %1245 = vsyncadd [#allocation5], 0
      %s1247 = sshll.u32 [#allocation12], 4
      %s1248 = int_to_ptr.vmem [resolvable:$true] %s1247
      %s1249 = sshll.u32 %s6, 4
      %s1250 = int_to_ptr.hbm [resolvable:$true] %s1249
      %1252 = dma.vmem_to_hbm [thread:$0]  %s1248, 32, %s1250, [#allocation5]
    $region49: #{tpu_custom_call.1} parent=1 // pred_fallthru
      _
    // Predicated region
    $region50: #{tpu_custom_call.1} parent=1 // pred_check
      _
    $region51: #{tpu_custom_call.1} parent=1 // pred_check_branch
      %1254 = sbr.rel (0) target = $region53
    $region52: #{tpu_custom_call.1} parent=1 // pred_region
      %1256 = vsyncadd [#allocation14], 0
      %s1258 = sshll.u32 [#allocation13], 4
      %s1259 = int_to_ptr.vmem [resolvable:$true] %s1258
      %s1260 = sshll.u32 %s7, 4
      %s1261 = int_to_ptr.hbm [resolvable:$true] %s1260
      %1263 = dma.vmem_to_hbm [thread:$0]  %s1259, 64, %s1261, [#allocation14]
    $region53: #{tpu_custom_call.1} parent=1 // pred_fallthru
      _
    // Predicated region
    $region54: #{tpu_custom_call.1} parent=1 // pred_check
      _
    $region55: #{tpu_custom_call.1} parent=1 // pred_check_branch
      %1265 = sbr.rel (0) target = $region57
    $region56: #{tpu_custom_call.1} parent=1 // pred_region
      %1267 = dma.done [#allocation5], 32
    $region57: #{tpu_custom_call.1} parent=1 // pred_fallthru
      _
    // Predicated region
    $region58: #{tpu_custom_call.1} parent=1 // pred_check
      _
    $region59: #{tpu_custom_call.1} parent=1 // pred_check_branch
      %1269 = sbr.rel (0) target = $region61
    $region60: #{tpu_custom_call.1} parent=1 // pred_region
      %1271 = dma.done [#allocation14], 64
    $region61: #{tpu_custom_call.1} parent=1 // pred_fallthru
      _
    %1272 = vsyncpa [#allocation4], 1
    %1273 = vsyncpa [#allocation7], 1
    %1274 = vsyncpa [#allocation10], 1
    %1275 = vsyncpa [#allocation5], 1
    %1276 = vsyncpa [#allocation14], 1

</llo_original>
